<compile_context>
chip_gen: v6e
topology: v6e:2x2x1
jax: 0.10.0
libtpu: 0.0.40
codegen_flags: <defaults>
</compile_context>

<pallas_src>
import jax
import jax.numpy as jnp
import numpy as np
from jax.experimental import pallas as pl
from jax.experimental.pallas import tpu as pltpu

# ----------------------- hyper-parameters (consistent with the module) -----------
B = 2                   # batch
CTX = 16                # context_length
PRED = 8                # prediction_length
S = 8                   # input_size (number of variates)
FDYN = 2                # num_feat_dynamic_real
FSTAT = 0               # num_feat_static_real
NF = FDYN + FSTAT + 3   # conv-mixer input channels
PATCH = (4, 4)          # patch_size
P0, P1 = PATCH
DIM = 16                # dim
DEPTH = 2               # depth
KSIZE = 3               # kernel_size (depthwise conv)
HP = CTX // P0          # time patches    = 4  (power of two -> '& (HP-1)' used below)
WP = S // P1            # variate patches = 2
EPS_BN = 1e-5
MIN_SCALE = 1e-5        # gluonts StdScaler minimum_scale

BHP = B * HP            # 8  : trunk rows (batch, time-patch)
BPRED = B * PRED        # 16 : tail rows  (batch, horizon)
W2 = WP * DIM           # 32 : trunk lane width (variate-patch major, channel minor)
C3 = 3 * S              # 24 : [df | loc | scale] lane width

# feature-slab lane layout per (b, hp) row (one full 128-lane vreg):
FCOLS = 128
COL_SC = 0              # [i*S + s]      scaled target at t = hp*P0 + i    -> lanes  0..31
COL_TF = P0 * S         # [i*FDYN + f]   dynamic time feature at t         -> lanes 32..39
COL_LAL = COL_TF + P0 * FDYN      # [s]  sign(loc)*log1p|loc|              -> lanes 40..47
COL_LSC = COL_LAL + S             # [s]  log(scale)                        -> lanes 48..55
FUSED = COL_LSC + S               # 56 real lanes, rest zero

# output-slab lane layout per (b, p) row:
OUT_COLS = 128          # [df(0:8) | loc(8:16) | scale(16:24) | scaler_loc(24:32) | scaler_scale(32:40) | 0]

# parameter-slab row layout (single (R_TOT, 128) f32 operand):
R_WG = 0                      # 128 rows, cols 0:W2 : patch-embed weight (feature-lane -> (wp,d))
R_PE = 128                    # 3 rows,   cols 0:W2 : conv bias, bn0 scale, bn0 bias (tiled over wp)
R_DW = 136                    # DEPTH*9 rows        : depthwise 3x3 taps (tiled over wp)
R_BLK = 160                   # DEPTH*6 rows        : b_dw, bn1s, bn1b, b_pw, bn2s, bn2b (tiled)
R_PW = 176                    # DEPTH*W2 rows       : block-diagonal pointwise weights
R_M1 = 240                    # BPRED rows, cols 0:BHP = block-diag Linear(HP->PRED), col BHP = its bias
R_CA = 256                    # W2 rows,  cols 0:C3 : Linear(WP->S) folded with args_proj
R_CF = 288                    # FDYN rows, cols 0:C3: future-time-feature coefficient rows
R_TB = 296                    # 1 row,    cols 0:C3 : folded tail bias
R_TOT = 304


# ----------------------------- in-kernel math helpers ----------------------------
def _gelu(x):
    # tanh-approximate GELU (EUP).
    # TODO(synk): torch.nn.GELU() uses the exact erf; tanh approx differs by <~1e-3.
    return 0.5 * x * (1.0 + jnp.tanh(0.7978845608028654 * (x + 0.044715 * x * x * x)))


def _softplus(x):
    # matches torch.nn.functional.softplus (beta=1, threshold=20)
    return jnp.where(x > 20.0, x, jnp.log1p(jnp.exp(x)))


# ----------------------------- the fused kernel -----------------------------------
def _fused_kernel(pt_ref, po_ref, ptf_ref, ftf_ref, w_ref, out_ref):
    f32 = jnp.float32

    # ---------------- StdScaler + lane-dense patch feature slab (all in vregs) -----
    feat_rows, loc_rows, scale_rows = [], [], []
    for b in range(B):
        xb = pt_ref[b * CTX:(b + 1) * CTX, :]                      # (CTX, S)
        wb = po_ref[b * CTX:(b + 1) * CTX, :]
        denom = jnp.maximum(jnp.sum(wb, axis=0, keepdims=True), 1.0)
        loc_b = jnp.sum(xb * wb, axis=0, keepdims=True) / denom    # (1, S)
        var_b = jnp.sum(((xb - loc_b) * wb) ** 2, axis=0, keepdims=True) / denom
        scale_b = jnp.sqrt(var_b + MIN_SCALE)
        inv_scale_b = 1.0 / scale_b
        sgn = jnp.where(loc_b > 0.0, 1.0, jnp.where(loc_b < 0.0, -1.0, 0.0))
        lal_b = sgn * jnp.log1p(jnp.abs(loc_b))                    # sign(loc)*log1p|loc|
        lsc_b = jnp.log(scale_b)
        loc_rows.append(jnp.broadcast_to(loc_b, (PRED, S)))
        scale_rows.append(jnp.broadcast_to(scale_b, (PRED, S)))

        pieces = []
        for i in range(P0):   # scaled target at rows t = hp*P0 + i (strided sublane load)
            xbi = pt_ref[pl.ds(b * CTX + i, HP, stride=P0), :]     # (HP, S)
            pieces.append((xbi - loc_b) * inv_scale_b)
        for i in range(P0):   # dynamic time features at the same rows
            pieces.append(ptf_ref[pl.ds(b * CTX + i, HP, stride=P0), :])   # (HP, FDYN)
        pieces.append(jnp.broadcast_to(lal_b, (HP, S)))
        pieces.append(jnp.broadcast_to(lsc_b, (HP, S)))
        pieces.append(jnp.zeros((HP, FCOLS - FUSED), f32))
        feat_rows.append(jnp.concatenate(pieces, axis=-1))         # (HP, 128)
    feat = jnp.concatenate(feat_rows, axis=0)                       # (B*HP, 128): one vreg

    # ---------------- patch embedding Conv2d(stride=patch) + GELU + BN -------------
    wg = w_ref[R_WG:R_WG + FCOLS, 0:W2]                             # (128, 32)
    h = jnp.dot(feat, wg, preferred_element_type=f32)               # (8, 32)
    h = (_gelu(h + w_ref[R_PE:R_PE + 1, 0:W2]) * w_ref[R_PE + 1:R_PE + 2, 0:W2]
         + w_ref[R_PE + 2:R_PE + 3, 0:W2])

    # ---------------- conv-mixer blocks (full-slab ops, no scratch) -----------------
    hp_idx = jax.lax.broadcasted_iota(jnp.int32, (BHP, W2), 0) & (HP - 1)   # hp index per row
    keep_prev = hp_idx != 0                     # rows whose hp-1 crosses the batch/edge boundary
    keep_next = hp_idx != HP - 1
    zrow = jnp.zeros((1, W2), f32)
    zhalf = jnp.zeros((BHP, DIM), f32)

    for blk in range(DEPTH):
        rb = R_BLK + blk * 6
        b_dw = w_ref[rb + 0:rb + 1, 0:W2]
        bn1s = w_ref[rb + 1:rb + 2, 0:W2]
        bn1b = w_ref[rb + 2:rb + 3, 0:W2]
        b_pw = w_ref[rb + 3:rb + 4, 0:W2]
        bn2s = w_ref[rb + 4:rb + 5, 0:W2]
        bn2b = w_ref[rb + 5:rb + 6, 0:W2]

        # +-1 time-patch taps: sublane shift + boundary mask ('same' padding, in vregs)
        h_prev = jnp.where(keep_prev, jnp.concatenate([zrow, h[:BHP - 1, :]], axis=0), 0.0)
        h_next = jnp.where(keep_next, jnp.concatenate([h[1:, :], zrow], axis=0), 0.0)

        # depthwise 3x3 conv: 9 slab-wide VPU MACs (+ lane shifts for the variate axis)
        acc = jnp.zeros((BHP, W2), f32)
        for ti, r in enumerate((h_prev, h, h_next)):
            rw = R_DW + blk * KSIZE * KSIZE + ti * KSIZE
            w_l = w_ref[rw + 0:rw + 1, 0:W2]
            w_c = w_ref[rw + 1:rw + 2, 0:W2]
            w_r = w_ref[rw + 2:rw + 3, 0:W2]
            r_left = jnp.concatenate([zhalf, r[:, 0:DIM]], axis=1)     # from variate patch wp-1
            r_right = jnp.concatenate([r[:, DIM:W2], zhalf], axis=1)   # from variate patch wp+1
            acc = acc + r_left * w_l + r * w_c + r_right * w_r

        z = h + _gelu(acc + b_dw) * bn1s + bn1b                        # Residual(dw->GELU->BN)

        # pointwise 1x1 conv (block-diagonal weight) + GELU + BN: one (8,32)@(32,32) dot
        pw = w_ref[R_PW + blk * W2:R_PW + (blk + 1) * W2, 0:W2]
        h = _gelu(jnp.dot(z, pw, preferred_element_type=f32) + b_pw) * bn2s + bn2b

    # ---------------- MLPPatchMap + StudentT args projection (linears folded) -------
    m1 = w_ref[R_M1:R_M1 + BPRED, 0:BHP]                # block-diag Linear(HP -> PRED)
    b1 = w_ref[R_M1:R_M1 + BPRED, BHP:BHP + 1]          # its bias, as a (16,1) column
    gmat = jnp.dot(m1, h, preferred_element_type=f32) + b1              # (16, 32)

    c_aug = w_ref[R_CA:R_CA + W2, 0:C3]                 # Linear(WP->S) folded with args_proj
    raw = jnp.dot(gmat, c_aug, preferred_element_type=f32) + w_ref[R_TB:R_TB + 1, 0:C3]
    ftf = ftf_ref[...]                                  # (16, 2)
    for f in range(FDYN):                               # 2-wide contraction stays on the VPU
        raw = raw + ftf[:, f:f + 1] * w_ref[R_CF + f:R_CF + f + 1, 0:C3]

    # StudentT domain map: df = 2 + softplus, loc = identity, scale = softplus
    df = 2.0 + _softplus(raw[:, 0:S])
    t_loc = raw[:, S:2 * S]
    t_scale = _softplus(raw[:, 2 * S:3 * S])

    loc_full = jnp.concatenate(loc_rows, axis=0)        # (16, 8) scaler loc per (b, p) row
    scale_full = jnp.concatenate(scale_rows, axis=0)
    out_ref[...] = jnp.concatenate(
        [df, t_loc, t_scale, loc_full, scale_full,
         jnp.zeros((BPRED, OUT_COLS - 5 * S), f32)], axis=-1)   # one unmasked (16,128) store


# ----------------------------- parameter init + packing ---------------------------
def init_params(key):
    keys = iter(jax.random.split(key, 64))

    def nrm(shape, scl):
        return np.asarray(jax.random.normal(next(keys), shape) * scl, dtype=np.float32)

    def bn_fold():
        # BatchNorm2d in inference mode, folded to per-channel scale/bias.
        gamma = 1.0 + nrm((DIM,), 0.1)
        beta = nrm((DIM,), 0.1)
        rmean = nrm((DIM,), 0.1)
        rvar = 1.0 + np.abs(nrm((DIM,), 0.1))
        s = gamma / np.sqrt(rvar + EPS_BN)
        return s.astype(np.float32), (beta - rmean * s).astype(np.float32)

    # ---- natural (torch-layout) random weights -----------------------------------
    wc = nrm((DIM, NF, P0, P1), (NF * P0 * P1) ** -0.5)     # patch-embed Conv2d weight
    bpe = nrm((DIM,), 0.02)
    bn0_s, bn0_b = bn_fold()

    blocks = []
    for _ in range(DEPTH):
        blocks.append(dict(
            w_dw=nrm((DIM, KSIZE, KSIZE), (KSIZE * KSIZE) ** -0.5),
            b_dw=nrm((DIM,), 0.02), bn1=bn_fold(),
            w_pw=nrm((DIM, DIM), DIM ** -0.5),              # torch layout (out, in)
            b_pw=nrm((DIM,), 0.02), bn2=bn_fold(),
        ))

    l1 = nrm((PRED, HP), HP ** -0.5)       # MLPPatchMap Linear(HP -> prediction_length)
    b1 = nrm((PRED,), 0.02)
    l2 = nrm((S, WP), WP ** -0.5)          # MLPPatchMap Linear(WP -> input_size)
    b2 = nrm((S,), 0.02)
    a_w = nrm((3, DIM + FDYN), (DIM + FDYN) ** -0.5)        # args_proj rows: [df, loc, scale]
    a_b = nrm((3,), 0.02)

    # ---- pack EVERYTHING into one lane-dense (R_TOT, 128) slab ---------------------
    slab = np.zeros((R_TOT, 128), np.float32)

    # patch-embed weight: feature-lane row -> trunk column (wp*DIM + d)
    # channel order in the torch concat: 0=scaled target, 1=log|loc|, 2=log scale, 3+f=time feats
    for wp in range(WP):
        for d in range(DIM):
            col = wp * DIM + d
            for i in range(P0):
                for j in range(P1):
                    s = wp * P1 + j
                    slab[R_WG + COL_SC + i * S + s, col] = wc[d, 0, i, j]
                for f in range(FDYN):
                    slab[R_WG + COL_TF + i * FDYN + f, col] = wc[d, 3 + f, i, :].sum()
            for j in range(P1):
                s = wp * P1 + j
                slab[R_WG + COL_LAL + s, col] = wc[d, 1, :, j].sum()   # const over time in patch
                slab[R_WG + COL_LSC + s, col] = wc[d, 2, :, j].sum()

    slab[R_PE + 0, 0:W2] = np.tile(bpe, WP)
    slab[R_PE + 1, 0:W2] = np.tile(bn0_s, WP)
    slab[R_PE + 2, 0:W2] = np.tile(bn0_b, WP)

    for n, blk in enumerate(blocks):
        for ti in range(KSIZE):
            for tj in range(KSIZE):
                slab[R_DW + n * KSIZE * KSIZE + ti * KSIZE + tj, 0:W2] = np.tile(blk["w_dw"][:, ti, tj], WP)
        rb = R_BLK + n * 6
        slab[rb + 0, 0:W2] = np.tile(blk["b_dw"], WP)
        slab[rb + 1, 0:W2] = np.tile(blk["bn1"][0], WP)
        slab[rb + 2, 0:W2] = np.tile(blk["bn1"][1], WP)
        slab[rb + 3, 0:W2] = np.tile(blk["b_pw"], WP)
        slab[rb + 4, 0:W2] = np.tile(blk["bn2"][0], WP)
        slab[rb + 5, 0:W2] = np.tile(blk["bn2"][1], WP)
        for wp in range(WP):   # block-diagonal pointwise weight for x @ W (W = w_pw.T)
            slab[R_PW + n * W2 + wp * DIM:R_PW + n * W2 + (wp + 1) * DIM,
                 wp * DIM:(wp + 1) * DIM] = blk["w_pw"].T

    for b in range(B):         # Linear(HP -> PRED), block-diagonal over the batch, bias in col BHP
        slab[R_M1 + b * PRED:R_M1 + (b + 1) * PRED, b * HP:(b + 1) * HP] = l1
        slab[R_M1 + b * PRED:R_M1 + (b + 1) * PRED, BHP] = b1

    # Linear(WP -> S) folded with the args-projection linear (exact algebraic fold)
    a_sum = a_w[:, :DIM].sum(axis=1)
    for wp in range(WP):
        for d in range(DIM):
            for k in range(3):
                slab[R_CA + wp * DIM + d, k * S:(k + 1) * S] = l2[:, wp] * a_w[k, d]
    for f in range(FDYN):
        for k in range(3):
            slab[R_CF + f, k * S:(k + 1) * S] = a_w[k, DIM + f]
    for k in range(3):
        slab[R_TB, k * S:(k + 1) * S] = b2 * a_sum[k] + a_b[k]

    return dict(slab=jnp.asarray(slab))


# ----------------------------- wrapper --------------------------------------------
def _vspec(shape):
    nd = len(shape)
    return pl.BlockSpec(shape, lambda i, _nd=nd: (0,) * _nd)


def conv_ts_mixer_forward(params, past_time_feat, past_target, past_observed, future_time_feat):
    # flatten batch/time outside the kernel (pure bitcasts, no data movement)
    pt2 = past_target.reshape(B * CTX, S)
    po2 = past_observed.reshape(B * CTX, S)
    ptf2 = past_time_feat.reshape(B * CTX, FDYN)
    ftf2 = future_time_feat.reshape(B * PRED, FDYN)

    operands = (pt2, po2, ptf2, ftf2, params["slab"])
    out = pl.pallas_call(
        _fused_kernel,
        out_shape=jax.ShapeDtypeStruct((BPRED, OUT_COLS), jnp.float32),
        grid=(1,),
        in_specs=[_vspec(a.shape) for a in operands],
        out_specs=_vspec((BPRED, OUT_COLS)),
        compiler_params=pltpu.CompilerParams(dimension_semantics=("arbitrary",)),
    )(*operands)

    out3 = out.reshape(B, PRED, OUT_COLS)
    df = out3[..., 0:S]
    t_loc = out3[..., S:2 * S]
    t_scale = out3[..., 2 * S:3 * S]
    loc = out3[:, 0:1, 3 * S:4 * S]          # scaler loc   (B, 1, S)
    scale = out3[:, 0:1, 4 * S:5 * S]        # scaler scale (B, 1, S)
    return (df, t_loc, t_scale), loc, scale


# ----------------------------- main -------------------------------------------------
if __name__ == "__main__":
    key = jax.random.PRNGKey(0)
    k_par, k_tgt, k_obs, k_ptf, k_ftf = jax.random.split(key, 5)

    params = init_params(k_par)
    past_target = jax.random.normal(k_tgt, (B, CTX, S), jnp.float32) * 2.0 + 0.5
    past_observed = (jax.random.uniform(k_obs, (B, CTX, S)) > 0.05).astype(jnp.float32)
    past_time_feat = jax.random.normal(k_ptf, (B, CTX, FDYN), jnp.float32)
    future_time_feat = jax.random.normal(k_ftf, (B, PRED, FDYN), jnp.float32)

    fwd = jax.jit(conv_ts_mixer_forward)
    (df, t_loc, t_scale), loc, scale = jax.block_until_ready(
        fwd(params, past_time_feat, past_target, past_observed, future_time_feat)
    )

    assert df.shape == (B, PRED, S) and t_loc.shape == (B, PRED, S) and t_scale.shape == (B, PRED, S)
    assert loc.shape == (B, 1, S) and scale.shape == (B, 1, S)
    for a in (df, t_loc, t_scale, loc, scale):
        assert bool(jnp.all(jnp.isfinite(a)))
    assert bool(jnp.all(df > 2.0)) and bool(jnp.all(t_scale > 0.0)) and bool(jnp.all(scale > 0.0))

    print("KERNEL_OK")
</pallas_src>

<mosaic_0001>
module attributes {stable_mosaic.version = 11 : i64} {
  func.func @_fused_kernel(%arg0: i32, %arg1: memref<32x8xf32, #tpu.memory_space<vmem>>, %arg2: memref<32x8xf32, #tpu.memory_space<vmem>>, %arg3: memref<32x2xf32, #tpu.memory_space<vmem>>, %arg4: memref<16x2xf32, #tpu.memory_space<vmem>>, %arg5: memref<304x128xf32, #tpu.memory_space<vmem>>, %arg6: memref<16x128xf32, #tpu.memory_space<vmem>>) attributes {dimension_semantics = [#tpu.dimension_semantics<arbitrary>], iteration_bounds = array<i64: 1>, scalar_prefetch = 0 : i64, scratch_operands = 0 : i64, tpu.core_type = #tpu.core_type<tc>, window_params = [{pipeline_mode = #tpu.pipeline_mode<synchronous>, transform_indices = @transform_0, window_bounds = array<i64: 32, 8>}, {pipeline_mode = #tpu.pipeline_mode<synchronous>, transform_indices = @transform_1, window_bounds = array<i64: 32, 8>}, {pipeline_mode = #tpu.pipeline_mode<synchronous>, transform_indices = @transform_2, window_bounds = array<i64: 32, 2>}, {pipeline_mode = #tpu.pipeline_mode<synchronous>, transform_indices = @transform_3, window_bounds = array<i64: 16, 2>}, {pipeline_mode = #tpu.pipeline_mode<synchronous>, transform_indices = @transform_4, window_bounds = array<i64: 304, 128>}, {pipeline_mode = #tpu.pipeline_mode<synchronous>, transform_indices = @transform_5, window_bounds = array<i64: 16, 128>}]} {
    %c0 = arith.constant 0 : index
    %c0_0 = arith.constant 0 : index
    %0 = vector.load %arg1[%c0, %c0_0] : memref<32x8xf32, #tpu.memory_space<vmem>>, vector<16x8xf32>
    %c0_1 = arith.constant 0 : index
    %c0_2 = arith.constant 0 : index
    %1 = vector.load %arg2[%c0_1, %c0_2] : memref<32x8xf32, #tpu.memory_space<vmem>>, vector<16x8xf32>
    %cst = arith.constant dense<0.000000e+00> : vector<8xf32>
    %2 = vector.multi_reduction <add>, %1, %cst [0] : vector<16x8xf32> to vector<8xf32>
    %3 = vector.shape_cast %2 : vector<8xf32> to vector<1x8xf32>
    %cst_3 = arith.constant 1.000000e+00 : f32
    %4 = vector.broadcast %cst_3 : f32 to vector<1x8xf32>
    %5 = arith.maximumf %3, %4 : vector<1x8xf32>
    %6 = arith.mulf %0, %1 : vector<16x8xf32>
    %cst_4 = arith.constant dense<0.000000e+00> : vector<8xf32>
    %7 = vector.multi_reduction <add>, %6, %cst_4 [0] : vector<16x8xf32> to vector<8xf32>
    %8 = vector.shape_cast %7 : vector<8xf32> to vector<1x8xf32>
    %9 = arith.divf %8, %5 : vector<1x8xf32>
    %10 = vector.broadcast %9 : vector<1x8xf32> to vector<16x8xf32>
    %11 = arith.subf %0, %10 : vector<16x8xf32>
    %12 = arith.mulf %11, %1 : vector<16x8xf32>
    %13 = arith.mulf %12, %12 : vector<16x8xf32>
    %cst_5 = arith.constant dense<0.000000e+00> : vector<8xf32>
    %14 = vector.multi_reduction <add>, %13, %cst_5 [0] : vector<16x8xf32> to vector<8xf32>
    %15 = vector.shape_cast %14 : vector<8xf32> to vector<1x8xf32>
    %16 = arith.divf %15, %5 : vector<1x8xf32>
    %cst_6 = arith.constant 9.99999974E-6 : f32
    %17 = vector.broadcast %cst_6 : f32 to vector<1x8xf32>
    %18 = arith.addf %16, %17 : vector<1x8xf32>
    %19 = math.sqrt %18 : vector<1x8xf32>
    %cst_7 = arith.constant 1.000000e+00 : f32
    %20 = vector.broadcast %cst_7 : f32 to vector<1x8xf32>
    %21 = arith.divf %20, %19 : vector<1x8xf32>
    %cst_8 = arith.constant 0.000000e+00 : f32
    %22 = vector.broadcast %cst_8 : f32 to vector<1x8xf32>
    %23 = arith.cmpf ogt, %9, %22 : vector<1x8xf32>
    %cst_9 = arith.constant 0.000000e+00 : f32
    %24 = vector.broadcast %cst_9 : f32 to vector<1x8xf32>
    %25 = arith.cmpf olt, %9, %24 : vector<1x8xf32>
    %cst_10 = arith.constant -1.000000e+00 : f32
    %cst_11 = arith.constant 0.000000e+00 : f32
    %26 = vector.broadcast %cst_10 : f32 to vector<1x8xf32>
    %27 = vector.broadcast %cst_11 : f32 to vector<1x8xf32>
    %28 = arith.select %25, %26, %27 : vector<1x8xi1>, vector<1x8xf32>
    %cst_12 = arith.constant 1.000000e+00 : f32
    %29 = vector.broadcast %cst_12 : f32 to vector<1x8xf32>
    %30 = arith.select %23, %29, %28 : vector<1x8xi1>, vector<1x8xf32>
    %31 = math.absf %9 : vector<1x8xf32>
    %32 = math.log1p %31 : vector<1x8xf32>
    %33 = arith.mulf %30, %32 : vector<1x8xf32>
    %34 = math.log %19 : vector<1x8xf32>
    %35 = vector.shape_cast %9 : vector<1x8xf32> to vector<1x8xf32>
    %36 = vector.broadcast %35 : vector<1x8xf32> to vector<8x8xf32>
    %37 = vector.shape_cast %19 : vector<1x8xf32> to vector<1x8xf32>
    %38 = vector.broadcast %37 : vector<1x8xf32> to vector<8x8xf32>
    %c0_13 = arith.constant 0 : index
    %c0_14 = arith.constant 0 : index
    %39 = tpu.strided_load %arg1[%c0_13, %c0_14] {strides = array<i32: 4, 1>} : memref<32x8xf32, #tpu.memory_space<vmem>>, vector<4x8xf32>
    %40 = vector.broadcast %9 : vector<1x8xf32> to vector<4x8xf32>
    %41 = arith.subf %39, %40 : vector<4x8xf32>
    %42 = vector.broadcast %21 : vector<1x8xf32> to vector<4x8xf32>
    %43 = arith.mulf %41, %42 : vector<4x8xf32>
    %c1 = arith.constant 1 : index
    %c0_15 = arith.constant 0 : index
    %44 = tpu.strided_load %arg1[%c1, %c0_15] {strides = array<i32: 4, 1>} : memref<32x8xf32, #tpu.memory_space<vmem>>, vector<4x8xf32>
    %45 = vector.broadcast %9 : vector<1x8xf32> to vector<4x8xf32>
    %46 = arith.subf %44, %45 : vector<4x8xf32>
    %47 = vector.broadcast %21 : vector<1x8xf32> to vector<4x8xf32>
    %48 = arith.mulf %46, %47 : vector<4x8xf32>
    %c2 = arith.constant 2 : index
    %c0_16 = arith.constant 0 : index
    %49 = tpu.strided_load %arg1[%c2, %c0_16] {strides = array<i32: 4, 1>} : memref<32x8xf32, #tpu.memory_space<vmem>>, vector<4x8xf32>
    %50 = vector.broadcast %9 : vector<1x8xf32> to vector<4x8xf32>
    %51 = arith.subf %49, %50 : vector<4x8xf32>
    %52 = vector.broadcast %21 : vector<1x8xf32> to vector<4x8xf32>
    %53 = arith.mulf %51, %52 : vector<4x8xf32>
    %c3 = arith.constant 3 : index
    %c0_17 = arith.constant 0 : index
    %54 = tpu.strided_load %arg1[%c3, %c0_17] {strides = array<i32: 4, 1>} : memref<32x8xf32, #tpu.memory_space<vmem>>, vector<4x8xf32>
    %55 = vector.broadcast %9 : vector<1x8xf32> to vector<4x8xf32>
    %56 = arith.subf %54, %55 : vector<4x8xf32>
    %57 = vector.broadcast %21 : vector<1x8xf32> to vector<4x8xf32>
    %58 = arith.mulf %56, %57 : vector<4x8xf32>
    %c0_18 = arith.constant 0 : index
    %c0_19 = arith.constant 0 : index
    %59 = tpu.strided_load %arg3[%c0_18, %c0_19] {strides = array<i32: 4, 1>} : memref<32x2xf32, #tpu.memory_space<vmem>>, vector<4x2xf32>
    %c1_20 = arith.constant 1 : index
    %c0_21 = arith.constant 0 : index
    %60 = tpu.strided_load %arg3[%c1_20, %c0_21] {strides = array<i32: 4, 1>} : memref<32x2xf32, #tpu.memory_space<vmem>>, vector<4x2xf32>
    %c2_22 = arith.constant 2 : index
    %c0_23 = arith.constant 0 : index
    %61 = tpu.strided_load %arg3[%c2_22, %c0_23] {strides = array<i32: 4, 1>} : memref<32x2xf32, #tpu.memory_space<vmem>>, vector<4x2xf32>
    %c3_24 = arith.constant 3 : index
    %c0_25 = arith.constant 0 : index
    %62 = tpu.strided_load %arg3[%c3_24, %c0_25] {strides = array<i32: 4, 1>} : memref<32x2xf32, #tpu.memory_space<vmem>>, vector<4x2xf32>
    %63 = vector.shape_cast %33 : vector<1x8xf32> to vector<1x8xf32>
    %64 = vector.broadcast %63 : vector<1x8xf32> to vector<4x8xf32>
    %65 = vector.shape_cast %34 : vector<1x8xf32> to vector<1x8xf32>
    %66 = vector.broadcast %65 : vector<1x8xf32> to vector<4x8xf32>
    %cst_26 = arith.constant 0.000000e+00 : f32
    %67 = vector.broadcast %cst_26 : f32 to vector<4x72xf32>
    %68 = tpu.concatenate %43, %48, %53, %58, %59, %60, %61, %62, %64, %66, %67 in 1 : vector<4x8xf32>, vector<4x8xf32>, vector<4x8xf32>, vector<4x8xf32>, vector<4x2xf32>, vector<4x2xf32>, vector<4x2xf32>, vector<4x2xf32>, vector<4x8xf32>, vector<4x8xf32>, vector<4x72xf32> -> vector<4x128xf32>
    %c16 = arith.constant 16 : index
    %c0_27 = arith.constant 0 : index
    %69 = vector.load %arg1[%c16, %c0_27] : memref<32x8xf32, #tpu.memory_space<vmem>>, vector<16x8xf32>
    %c16_28 = arith.constant 16 : index
    %c0_29 = arith.constant 0 : index
    %70 = vector.load %arg2[%c16_28, %c0_29] : memref<32x8xf32, #tpu.memory_space<vmem>>, vector<16x8xf32>
    %cst_30 = arith.constant dense<0.000000e+00> : vector<8xf32>
    %71 = vector.multi_reduction <add>, %70, %cst_30 [0] : vector<16x8xf32> to vector<8xf32>
    %72 = vector.shape_cast %71 : vector<8xf32> to vector<1x8xf32>
    %cst_31 = arith.constant 1.000000e+00 : f32
    %73 = vector.broadcast %cst_31 : f32 to vector<1x8xf32>
    %74 = arith.maximumf %72, %73 : vector<1x8xf32>
    %75 = arith.mulf %69, %70 : vector<16x8xf32>
    %cst_32 = arith.constant dense<0.000000e+00> : vector<8xf32>
    %76 = vector.multi_reduction <add>, %75, %cst_32 [0] : vector<16x8xf32> to vector<8xf32>
    %77 = vector.shape_cast %76 : vector<8xf32> to vector<1x8xf32>
    %78 = arith.divf %77, %74 : vector<1x8xf32>
    %79 = vector.broadcast %78 : vector<1x8xf32> to vector<16x8xf32>
    %80 = arith.subf %69, %79 : vector<16x8xf32>
    %81 = arith.mulf %80, %70 : vector<16x8xf32>
    %82 = arith.mulf %81, %81 : vector<16x8xf32>
    %cst_33 = arith.constant dense<0.000000e+00> : vector<8xf32>
    %83 = vector.multi_reduction <add>, %82, %cst_33 [0] : vector<16x8xf32> to vector<8xf32>
    %84 = vector.shape_cast %83 : vector<8xf32> to vector<1x8xf32>
    %85 = arith.divf %84, %74 : vector<1x8xf32>
    %cst_34 = arith.constant 9.99999974E-6 : f32
    %86 = vector.broadcast %cst_34 : f32 to vector<1x8xf32>
    %87 = arith.addf %85, %86 : vector<1x8xf32>
    %88 = math.sqrt %87 : vector<1x8xf32>
    %cst_35 = arith.constant 1.000000e+00 : f32
    %89 = vector.broadcast %cst_35 : f32 to vector<1x8xf32>
    %90 = arith.divf %89, %88 : vector<1x8xf32>
    %cst_36 = arith.constant 0.000000e+00 : f32
    %91 = vector.broadcast %cst_36 : f32 to vector<1x8xf32>
    %92 = arith.cmpf ogt, %78, %91 : vector<1x8xf32>
    %cst_37 = arith.constant 0.000000e+00 : f32
    %93 = vector.broadcast %cst_37 : f32 to vector<1x8xf32>
    %94 = arith.cmpf olt, %78, %93 : vector<1x8xf32>
    %cst_38 = arith.constant -1.000000e+00 : f32
    %cst_39 = arith.constant 0.000000e+00 : f32
    %95 = vector.broadcast %cst_38 : f32 to vector<1x8xf32>
    %96 = vector.broadcast %cst_39 : f32 to vector<1x8xf32>
    %97 = arith.select %94, %95, %96 : vector<1x8xi1>, vector<1x8xf32>
    %cst_40 = arith.constant 1.000000e+00 : f32
    %98 = vector.broadcast %cst_40 : f32 to vector<1x8xf32>
    %99 = arith.select %92, %98, %97 : vector<1x8xi1>, vector<1x8xf32>
    %100 = math.absf %78 : vector<1x8xf32>
    %101 = math.log1p %100 : vector<1x8xf32>
    %102 = arith.mulf %99, %101 : vector<1x8xf32>
    %103 = math.log %88 : vector<1x8xf32>
    %104 = vector.shape_cast %78 : vector<1x8xf32> to vector<1x8xf32>
    %105 = vector.broadcast %104 : vector<1x8xf32> to vector<8x8xf32>
    %106 = vector.shape_cast %88 : vector<1x8xf32> to vector<1x8xf32>
    %107 = vector.broadcast %106 : vector<1x8xf32> to vector<8x8xf32>
    %c16_41 = arith.constant 16 : index
    %c0_42 = arith.constant 0 : index
    %108 = tpu.strided_load %arg1[%c16_41, %c0_42] {strides = array<i32: 4, 1>} : memref<32x8xf32, #tpu.memory_space<vmem>>, vector<4x8xf32>
    %109 = vector.broadcast %78 : vector<1x8xf32> to vector<4x8xf32>
    %110 = arith.subf %108, %109 : vector<4x8xf32>
    %111 = vector.broadcast %90 : vector<1x8xf32> to vector<4x8xf32>
    %112 = arith.mulf %110, %111 : vector<4x8xf32>
    %c17 = arith.constant 17 : index
    %c0_43 = arith.constant 0 : index
    %113 = tpu.strided_load %arg1[%c17, %c0_43] {strides = array<i32: 4, 1>} : memref<32x8xf32, #tpu.memory_space<vmem>>, vector<4x8xf32>
    %114 = vector.broadcast %78 : vector<1x8xf32> to vector<4x8xf32>
    %115 = arith.subf %113, %114 : vector<4x8xf32>
    %116 = vector.broadcast %90 : vector<1x8xf32> to vector<4x8xf32>
    %117 = arith.mulf %115, %116 : vector<4x8xf32>
    %c18 = arith.constant 18 : index
    %c0_44 = arith.constant 0 : index
    %118 = tpu.strided_load %arg1[%c18, %c0_44] {strides = array<i32: 4, 1>} : memref<32x8xf32, #tpu.memory_space<vmem>>, vector<4x8xf32>
    %119 = vector.broadcast %78 : vector<1x8xf32> to vector<4x8xf32>
    %120 = arith.subf %118, %119 : vector<4x8xf32>
    %121 = vector.broadcast %90 : vector<1x8xf32> to vector<4x8xf32>
    %122 = arith.mulf %120, %121 : vector<4x8xf32>
    %c19 = arith.constant 19 : index
    %c0_45 = arith.constant 0 : index
    %123 = tpu.strided_load %arg1[%c19, %c0_45] {strides = array<i32: 4, 1>} : memref<32x8xf32, #tpu.memory_space<vmem>>, vector<4x8xf32>
    %124 = vector.broadcast %78 : vector<1x8xf32> to vector<4x8xf32>
    %125 = arith.subf %123, %124 : vector<4x8xf32>
    %126 = vector.broadcast %90 : vector<1x8xf32> to vector<4x8xf32>
    %127 = arith.mulf %125, %126 : vector<4x8xf32>
    %c16_46 = arith.constant 16 : index
    %c0_47 = arith.constant 0 : index
    %128 = tpu.strided_load %arg3[%c16_46, %c0_47] {strides = array<i32: 4, 1>} : memref<32x2xf32, #tpu.memory_space<vmem>>, vector<4x2xf32>
    %c17_48 = arith.constant 17 : index
    %c0_49 = arith.constant 0 : index
    %129 = tpu.strided_load %arg3[%c17_48, %c0_49] {strides = array<i32: 4, 1>} : memref<32x2xf32, #tpu.memory_space<vmem>>, vector<4x2xf32>
    %c18_50 = arith.constant 18 : index
    %c0_51 = arith.constant 0 : index
    %130 = tpu.strided_load %arg3[%c18_50, %c0_51] {strides = array<i32: 4, 1>} : memref<32x2xf32, #tpu.memory_space<vmem>>, vector<4x2xf32>
    %c19_52 = arith.constant 19 : index
    %c0_53 = arith.constant 0 : index
    %131 = tpu.strided_load %arg3[%c19_52, %c0_53] {strides = array<i32: 4, 1>} : memref<32x2xf32, #tpu.memory_space<vmem>>, vector<4x2xf32>
    %132 = vector.shape_cast %102 : vector<1x8xf32> to vector<1x8xf32>
    %133 = vector.broadcast %132 : vector<1x8xf32> to vector<4x8xf32>
    %134 = vector.shape_cast %103 : vector<1x8xf32> to vector<1x8xf32>
    %135 = vector.broadcast %134 : vector<1x8xf32> to vector<4x8xf32>
    %cst_54 = arith.constant 0.000000e+00 : f32
    %136 = vector.broadcast %cst_54 : f32 to vector<4x72xf32>
    %137 = tpu.concatenate %112, %117, %122, %127, %128, %129, %130, %131, %133, %135, %136 in 1 : vector<4x8xf32>, vector<4x8xf32>, vector<4x8xf32>, vector<4x8xf32>, vector<4x2xf32>, vector<4x2xf32>, vector<4x2xf32>, vector<4x2xf32>, vector<4x8xf32>, vector<4x8xf32>, vector<4x72xf32> -> vector<4x128xf32>
    %138 = tpu.concatenate %68, %137 in 0 : vector<4x128xf32>, vector<4x128xf32> -> vector<8x128xf32>
    %c0_55 = arith.constant 0 : index
    %c0_56 = arith.constant 0 : index
    %139 = vector.load %arg5[%c0_55, %c0_56] : memref<304x128xf32, #tpu.memory_space<vmem>>, vector<128x32xf32>
    %cst_57 = arith.constant dense<0.000000e+00> : vector<8x32xf32>
    %140 = tpu.matmul %138, %139, %cst_57 {dimension_numbers = #tpu.dot_dimension_numbers<[1], [0], [0], [1], [0, 0, 1, 1], [], []>} : vector<8x128xf32>, vector<128x32xf32>, vector<8x32xf32> -> vector<8x32xf32>
    %c128 = arith.constant 128 : index
    %c0_58 = arith.constant 0 : index
    %141 = vector.load %arg5[%c128, %c0_58] : memref<304x128xf32, #tpu.memory_space<vmem>>, vector<1x32xf32>
    %142 = vector.broadcast %141 : vector<1x32xf32> to vector<8x32xf32>
    %143 = arith.addf %140, %142 : vector<8x32xf32>
    %cst_59 = arith.constant 5.000000e-01 : f32
    %144 = vector.broadcast %cst_59 : f32 to vector<8x32xf32>
    %145 = arith.mulf %144, %143 : vector<8x32xf32>
    %cst_60 = arith.constant 4.471500e-02 : f32
    %146 = vector.broadcast %cst_60 : f32 to vector<8x32xf32>
    %147 = arith.mulf %146, %143 : vector<8x32xf32>
    %148 = arith.mulf %147, %143 : vector<8x32xf32>
    %149 = arith.mulf %148, %143 : vector<8x32xf32>
    %150 = arith.addf %143, %149 : vector<8x32xf32>
    %cst_61 = arith.constant 0.797884583 : f32
    %151 = vector.broadcast %cst_61 : f32 to vector<8x32xf32>
    %152 = arith.mulf %151, %150 : vector<8x32xf32>
    %153 = math.tanh %152 : vector<8x32xf32>
    %cst_62 = arith.constant 1.000000e+00 : f32
    %154 = vector.broadcast %cst_62 : f32 to vector<8x32xf32>
    %155 = arith.addf %154, %153 : vector<8x32xf32>
    %156 = arith.mulf %145, %155 : vector<8x32xf32>
    %c129 = arith.constant 129 : index
    %c0_63 = arith.constant 0 : index
    %157 = vector.load %arg5[%c129, %c0_63] : memref<304x128xf32, #tpu.memory_space<vmem>>, vector<1x32xf32>
    %158 = vector.broadcast %157 : vector<1x32xf32> to vector<8x32xf32>
    %159 = arith.mulf %156, %158 : vector<8x32xf32>
    %c130 = arith.constant 130 : index
    %c0_64 = arith.constant 0 : index
    %160 = vector.load %arg5[%c130, %c0_64] : memref<304x128xf32, #tpu.memory_space<vmem>>, vector<1x32xf32>
    %161 = vector.broadcast %160 : vector<1x32xf32> to vector<8x32xf32>
    %162 = arith.addf %159, %161 : vector<8x32xf32>
    %163 = tpu.iota {dimensions = array<i32: 0>} : vector<8x32xi32>
    %c3_i32 = arith.constant 3 : i32
    %164 = vector.broadcast %c3_i32 : i32 to vector<8x32xi32>
    %165 = arith.andi %163, %164 : vector<8x32xi32>
    %c0_i32 = arith.constant 0 : i32
    %166 = vector.broadcast %c0_i32 : i32 to vector<8x32xi32>
    %167 = arith.cmpi ne, %165, %166 : vector<8x32xi32>
    %c3_i32_65 = arith.constant 3 : i32
    %168 = vector.broadcast %c3_i32_65 : i32 to vector<8x32xi32>
    %169 = arith.cmpi ne, %165, %168 : vector<8x32xi32>
    %cst_66 = arith.constant 0.000000e+00 : f32
    %170 = vector.broadcast %cst_66 : f32 to vector<1x32xf32>
    %cst_67 = arith.constant 0.000000e+00 : f32
    %171 = vector.broadcast %cst_67 : f32 to vector<8x16xf32>
    %c160 = arith.constant 160 : index
    %c0_68 = arith.constant 0 : index
    %172 = vector.load %arg5[%c160, %c0_68] : memref<304x128xf32, #tpu.memory_space<vmem>>, vector<1x32xf32>
    %c161 = arith.constant 161 : index
    %c0_69 = arith.constant 0 : index
    %173 = vector.load %arg5[%c161, %c0_69] : memref<304x128xf32, #tpu.memory_space<vmem>>, vector<1x32xf32>
    %c162 = arith.constant 162 : index
    %c0_70 = arith.constant 0 : index
    %174 = vector.load %arg5[%c162, %c0_70] : memref<304x128xf32, #tpu.memory_space<vmem>>, vector<1x32xf32>
    %c163 = arith.constant 163 : index
    %c0_71 = arith.constant 0 : index
    %175 = vector.load %arg5[%c163, %c0_71] : memref<304x128xf32, #tpu.memory_space<vmem>>, vector<1x32xf32>
    %c164 = arith.constant 164 : index
    %c0_72 = arith.constant 0 : index
    %176 = vector.load %arg5[%c164, %c0_72] : memref<304x128xf32, #tpu.memory_space<vmem>>, vector<1x32xf32>
    %c165 = arith.constant 165 : index
    %c0_73 = arith.constant 0 : index
    %177 = vector.load %arg5[%c165, %c0_73] : memref<304x128xf32, #tpu.memory_space<vmem>>, vector<1x32xf32>
    %178 = vector.extract_strided_slice %162 {offsets = [0, 0], sizes = [7, 32], strides = [1, 1]} : vector<8x32xf32> to vector<7x32xf32>
    %179 = tpu.concatenate %170, %178 in 0 : vector<1x32xf32>, vector<7x32xf32> -> vector<8x32xf32>
    %cst_74 = arith.constant 0.000000e+00 : f32
    %180 = vector.broadcast %cst_74 : f32 to vector<8x32xf32>
    %181 = arith.select %167, %179, %180 : vector<8x32xi1>, vector<8x32xf32>
    %182 = vector.extract_strided_slice %162 {offsets = [1, 0], sizes = [7, 32], strides = [1, 1]} : vector<8x32xf32> to vector<7x32xf32>
    %183 = tpu.concatenate %182, %170 in 0 : vector<7x32xf32>, vector<1x32xf32> -> vector<8x32xf32>
    %cst_75 = arith.constant 0.000000e+00 : f32
    %184 = vector.broadcast %cst_75 : f32 to vector<8x32xf32>
    %185 = arith.select %169, %183, %184 : vector<8x32xi1>, vector<8x32xf32>
    %cst_76 = arith.constant 0.000000e+00 : f32
    %186 = vector.broadcast %cst_76 : f32 to vector<8x32xf32>
    %c136 = arith.constant 136 : index
    %c0_77 = arith.constant 0 : index
    %187 = vector.load %arg5[%c136, %c0_77] : memref<304x128xf32, #tpu.memory_space<vmem>>, vector<1x32xf32>
    %c137 = arith.constant 137 : index
    %c0_78 = arith.constant 0 : index
    %188 = vector.load %arg5[%c137, %c0_78] : memref<304x128xf32, #tpu.memory_space<vmem>>, vector<1x32xf32>
    %c138 = arith.constant 138 : index
    %c0_79 = arith.constant 0 : index
    %189 = vector.load %arg5[%c138, %c0_79] : memref<304x128xf32, #tpu.memory_space<vmem>>, vector<1x32xf32>
    %190 = vector.extract_strided_slice %181 {offsets = [0, 0], sizes = [8, 16], strides = [1, 1]} : vector<8x32xf32> to vector<8x16xf32>
    %191 = tpu.concatenate %171, %190 in 1 : vector<8x16xf32>, vector<8x16xf32> -> vector<8x32xf32>
    %192 = vector.extract_strided_slice %181 {offsets = [0, 16], sizes = [8, 16], strides = [1, 1]} : vector<8x32xf32> to vector<8x16xf32>
    %193 = tpu.concatenate %192, %171 in 1 : vector<8x16xf32>, vector<8x16xf32> -> vector<8x32xf32>
    %194 = vector.broadcast %187 : vector<1x32xf32> to vector<8x32xf32>
    %195 = arith.mulf %191, %194 : vector<8x32xf32>
    %196 = arith.addf %186, %195 : vector<8x32xf32>
    %197 = vector.broadcast %188 : vector<1x32xf32> to vector<8x32xf32>
    %198 = arith.mulf %181, %197 : vector<8x32xf32>
    %199 = arith.addf %196, %198 : vector<8x32xf32>
    %200 = vector.broadcast %189 : vector<1x32xf32> to vector<8x32xf32>
    %201 = arith.mulf %193, %200 : vector<8x32xf32>
    %202 = arith.addf %199, %201 : vector<8x32xf32>
    %c139 = arith.constant 139 : index
    %c0_80 = arith.constant 0 : index
    %203 = vector.load %arg5[%c139, %c0_80] : memref<304x128xf32, #tpu.memory_space<vmem>>, vector<1x32xf32>
    %c140 = arith.constant 140 : index
    %c0_81 = arith.constant 0 : index
    %204 = vector.load %arg5[%c140, %c0_81] : memref<304x128xf32, #tpu.memory_space<vmem>>, vector<1x32xf32>
    %c141 = arith.constant 141 : index
    %c0_82 = arith.constant 0 : index
    %205 = vector.load %arg5[%c141, %c0_82] : memref<304x128xf32, #tpu.memory_space<vmem>>, vector<1x32xf32>
    %206 = vector.extract_strided_slice %162 {offsets = [0, 0], sizes = [8, 16], strides = [1, 1]} : vector<8x32xf32> to vector<8x16xf32>
    %207 = tpu.concatenate %171, %206 in 1 : vector<8x16xf32>, vector<8x16xf32> -> vector<8x32xf32>
    %208 = vector.extract_strided_slice %162 {offsets = [0, 16], sizes = [8, 16], strides = [1, 1]} : vector<8x32xf32> to vector<8x16xf32>
    %209 = tpu.concatenate %208, %171 in 1 : vector<8x16xf32>, vector<8x16xf32> -> vector<8x32xf32>
    %210 = vector.broadcast %203 : vector<1x32xf32> to vector<8x32xf32>
    %211 = arith.mulf %207, %210 : vector<8x32xf32>
    %212 = arith.addf %202, %211 : vector<8x32xf32>
    %213 = vector.broadcast %204 : vector<1x32xf32> to vector<8x32xf32>
    %214 = arith.mulf %162, %213 : vector<8x32xf32>
    %215 = arith.addf %212, %214 : vector<8x32xf32>
    %216 = vector.broadcast %205 : vector<1x32xf32> to vector<8x32xf32>
    %217 = arith.mulf %209, %216 : vector<8x32xf32>
    %218 = arith.addf %215, %217 : vector<8x32xf32>
    %c142 = arith.constant 142 : index
    %c0_83 = arith.constant 0 : index
    %219 = vector.load %arg5[%c142, %c0_83] : memref<304x128xf32, #tpu.memory_space<vmem>>, vector<1x32xf32>
    %c143 = arith.constant 143 : index
    %c0_84 = arith.constant 0 : index
    %220 = vector.load %arg5[%c143, %c0_84] : memref<304x128xf32, #tpu.memory_space<vmem>>, vector<1x32xf32>
    %c144 = arith.constant 144 : index
    %c0_85 = arith.constant 0 : index
    %221 = vector.load %arg5[%c144, %c0_85] : memref<304x128xf32, #tpu.memory_space<vmem>>, vector<1x32xf32>
    %222 = vector.extract_strided_slice %185 {offsets = [0, 0], sizes = [8, 16], strides = [1, 1]} : vector<8x32xf32> to vector<8x16xf32>
    %223 = tpu.concatenate %171, %222 in 1 : vector<8x16xf32>, vector<8x16xf32> -> vector<8x32xf32>
    %224 = vector.extract_strided_slice %185 {offsets = [0, 16], sizes = [8, 16], strides = [1, 1]} : vector<8x32xf32> to vector<8x16xf32>
    %225 = tpu.concatenate %224, %171 in 1 : vector<8x16xf32>, vector<8x16xf32> -> vector<8x32xf32>
    %226 = vector.broadcast %219 : vector<1x32xf32> to vector<8x32xf32>
    %227 = arith.mulf %223, %226 : vector<8x32xf32>
    %228 = arith.addf %218, %227 : vector<8x32xf32>
    %229 = vector.broadcast %220 : vector<1x32xf32> to vector<8x32xf32>
    %230 = arith.mulf %185, %229 : vector<8x32xf32>
    %231 = arith.addf %228, %230 : vector<8x32xf32>
    %232 = vector.broadcast %221 : vector<1x32xf32> to vector<8x32xf32>
    %233 = arith.mulf %225, %232 : vector<8x32xf32>
    %234 = arith.addf %231, %233 : vector<8x32xf32>
    %235 = vector.broadcast %172 : vector<1x32xf32> to vector<8x32xf32>
    %236 = arith.addf %234, %235 : vector<8x32xf32>
    %cst_86 = arith.constant 5.000000e-01 : f32
    %237 = vector.broadcast %cst_86 : f32 to vector<8x32xf32>
    %238 = arith.mulf %237, %236 : vector<8x32xf32>
    %cst_87 = arith.constant 4.471500e-02 : f32
    %239 = vector.broadcast %cst_87 : f32 to vector<8x32xf32>
    %240 = arith.mulf %239, %236 : vector<8x32xf32>
    %241 = arith.mulf %240, %236 : vector<8x32xf32>
    %242 = arith.mulf %241, %236 : vector<8x32xf32>
    %243 = arith.addf %236, %242 : vector<8x32xf32>
    %cst_88 = arith.constant 0.797884583 : f32
    %244 = vector.broadcast %cst_88 : f32 to vector<8x32xf32>
    %245 = arith.mulf %244, %243 : vector<8x32xf32>
    %246 = math.tanh %245 : vector<8x32xf32>
    %cst_89 = arith.constant 1.000000e+00 : f32
    %247 = vector.broadcast %cst_89 : f32 to vector<8x32xf32>
    %248 = arith.addf %247, %246 : vector<8x32xf32>
    %249 = arith.mulf %238, %248 : vector<8x32xf32>
    %250 = vector.broadcast %173 : vector<1x32xf32> to vector<8x32xf32>
    %251 = arith.mulf %249, %250 : vector<8x32xf32>
    %252 = arith.addf %162, %251 : vector<8x32xf32>
    %253 = vector.broadcast %174 : vector<1x32xf32> to vector<8x32xf32>
    %254 = arith.addf %252, %253 : vector<8x32xf32>
    %c176 = arith.constant 176 : index
    %c0_90 = arith.constant 0 : index
    %255 = vector.load %arg5[%c176, %c0_90] : memref<304x128xf32, #tpu.memory_space<vmem>>, vector<32x32xf32>
    %cst_91 = arith.constant dense<0.000000e+00> : vector<8x32xf32>
    %256 = tpu.matmul %254, %255, %cst_91 {dimension_numbers = #tpu.dot_dimension_numbers<[1], [0], [0], [1], [0, 0, 1, 1], [], []>} : vector<8x32xf32>, vector<32x32xf32>, vector<8x32xf32> -> vector<8x32xf32>
    %257 = vector.broadcast %175 : vector<1x32xf32> to vector<8x32xf32>
    %258 = arith.addf %256, %257 : vector<8x32xf32>
    %cst_92 = arith.constant 5.000000e-01 : f32
    %259 = vector.broadcast %cst_92 : f32 to vector<8x32xf32>
    %260 = arith.mulf %259, %258 : vector<8x32xf32>
    %cst_93 = arith.constant 4.471500e-02 : f32
    %261 = vector.broadcast %cst_93 : f32 to vector<8x32xf32>
    %262 = arith.mulf %261, %258 : vector<8x32xf32>
    %263 = arith.mulf %262, %258 : vector<8x32xf32>
    %264 = arith.mulf %263, %258 : vector<8x32xf32>
    %265 = arith.addf %258, %264 : vector<8x32xf32>
    %cst_94 = arith.constant 0.797884583 : f32
    %266 = vector.broadcast %cst_94 : f32 to vector<8x32xf32>
    %267 = arith.mulf %266, %265 : vector<8x32xf32>
    %268 = math.tanh %267 : vector<8x32xf32>
    %cst_95 = arith.constant 1.000000e+00 : f32
    %269 = vector.broadcast %cst_95 : f32 to vector<8x32xf32>
    %270 = arith.addf %269, %268 : vector<8x32xf32>
    %271 = arith.mulf %260, %270 : vector<8x32xf32>
    %272 = vector.broadcast %176 : vector<1x32xf32> to vector<8x32xf32>
    %273 = arith.mulf %271, %272 : vector<8x32xf32>
    %274 = vector.broadcast %177 : vector<1x32xf32> to vector<8x32xf32>
    %275 = arith.addf %273, %274 : vector<8x32xf32>
    %c166 = arith.constant 166 : index
    %c0_96 = arith.constant 0 : index
    %276 = vector.load %arg5[%c166, %c0_96] : memref<304x128xf32, #tpu.memory_space<vmem>>, vector<1x32xf32>
    %c167 = arith.constant 167 : index
    %c0_97 = arith.constant 0 : index
    %277 = vector.load %arg5[%c167, %c0_97] : memref<304x128xf32, #tpu.memory_space<vmem>>, vector<1x32xf32>
    %c168 = arith.constant 168 : index
    %c0_98 = arith.constant 0 : index
    %278 = vector.load %arg5[%c168, %c0_98] : memref<304x128xf32, #tpu.memory_space<vmem>>, vector<1x32xf32>
    %c169 = arith.constant 169 : index
    %c0_99 = arith.constant 0 : index
    %279 = vector.load %arg5[%c169, %c0_99] : memref<304x128xf32, #tpu.memory_space<vmem>>, vector<1x32xf32>
    %c170 = arith.constant 170 : index
    %c0_100 = arith.constant 0 : index
    %280 = vector.load %arg5[%c170, %c0_100] : memref<304x128xf32, #tpu.memory_space<vmem>>, vector<1x32xf32>
    %c171 = arith.constant 171 : index
    %c0_101 = arith.constant 0 : index
    %281 = vector.load %arg5[%c171, %c0_101] : memref<304x128xf32, #tpu.memory_space<vmem>>, vector<1x32xf32>
    %282 = vector.extract_strided_slice %275 {offsets = [0, 0], sizes = [7, 32], strides = [1, 1]} : vector<8x32xf32> to vector<7x32xf32>
    %283 = tpu.concatenate %170, %282 in 0 : vector<1x32xf32>, vector<7x32xf32> -> vector<8x32xf32>
    %cst_102 = arith.constant 0.000000e+00 : f32
    %284 = vector.broadcast %cst_102 : f32 to vector<8x32xf32>
    %285 = arith.select %167, %283, %284 : vector<8x32xi1>, vector<8x32xf32>
    %286 = vector.extract_strided_slice %275 {offsets = [1, 0], sizes = [7, 32], strides = [1, 1]} : vector<8x32xf32> to vector<7x32xf32>
    %287 = tpu.concatenate %286, %170 in 0 : vector<7x32xf32>, vector<1x32xf32> -> vector<8x32xf32>
    %cst_103 = arith.constant 0.000000e+00 : f32
    %288 = vector.broadcast %cst_103 : f32 to vector<8x32xf32>
    %289 = arith.select %169, %287, %288 : vector<8x32xi1>, vector<8x32xf32>
    %cst_104 = arith.constant 0.000000e+00 : f32
    %290 = vector.broadcast %cst_104 : f32 to vector<8x32xf32>
    %c145 = arith.constant 145 : index
    %c0_105 = arith.constant 0 : index
    %291 = vector.load %arg5[%c145, %c0_105] : memref<304x128xf32, #tpu.memory_space<vmem>>, vector<1x32xf32>
    %c146 = arith.constant 146 : index
    %c0_106 = arith.constant 0 : index
    %292 = vector.load %arg5[%c146, %c0_106] : memref<304x128xf32, #tpu.memory_space<vmem>>, vector<1x32xf32>
    %c147 = arith.constant 147 : index
    %c0_107 = arith.constant 0 : index
    %293 = vector.load %arg5[%c147, %c0_107] : memref<304x128xf32, #tpu.memory_space<vmem>>, vector<1x32xf32>
    %294 = vector.extract_strided_slice %285 {offsets = [0, 0], sizes = [8, 16], strides = [1, 1]} : vector<8x32xf32> to vector<8x16xf32>
    %295 = tpu.concatenate %171, %294 in 1 : vector<8x16xf32>, vector<8x16xf32> -> vector<8x32xf32>
    %296 = vector.extract_strided_slice %285 {offsets = [0, 16], sizes = [8, 16], strides = [1, 1]} : vector<8x32xf32> to vector<8x16xf32>
    %297 = tpu.concatenate %296, %171 in 1 : vector<8x16xf32>, vector<8x16xf32> -> vector<8x32xf32>
    %298 = vector.broadcast %291 : vector<1x32xf32> to vector<8x32xf32>
    %299 = arith.mulf %295, %298 : vector<8x32xf32>
    %300 = arith.addf %290, %299 : vector<8x32xf32>
    %301 = vector.broadcast %292 : vector<1x32xf32> to vector<8x32xf32>
    %302 = arith.mulf %285, %301 : vector<8x32xf32>
    %303 = arith.addf %300, %302 : vector<8x32xf32>
    %304 = vector.broadcast %293 : vector<1x32xf32> to vector<8x32xf32>
    %305 = arith.mulf %297, %304 : vector<8x32xf32>
    %306 = arith.addf %303, %305 : vector<8x32xf32>
    %c148 = arith.constant 148 : index
    %c0_108 = arith.constant 0 : index
    %307 = vector.load %arg5[%c148, %c0_108] : memref<304x128xf32, #tpu.memory_space<vmem>>, vector<1x32xf32>
    %c149 = arith.constant 149 : index
    %c0_109 = arith.constant 0 : index
    %308 = vector.load %arg5[%c149, %c0_109] : memref<304x128xf32, #tpu.memory_space<vmem>>, vector<1x32xf32>
    %c150 = arith.constant 150 : index
    %c0_110 = arith.constant 0 : index
    %309 = vector.load %arg5[%c150, %c0_110] : memref<304x128xf32, #tpu.memory_space<vmem>>, vector<1x32xf32>
    %310 = vector.extract_strided_slice %275 {offsets = [0, 0], sizes = [8, 16], strides = [1, 1]} : vector<8x32xf32> to vector<8x16xf32>
    %311 = tpu.concatenate %171, %310 in 1 : vector<8x16xf32>, vector<8x16xf32> -> vector<8x32xf32>
    %312 = vector.extract_strided_slice %275 {offsets = [0, 16], sizes = [8, 16], strides = [1, 1]} : vector<8x32xf32> to vector<8x16xf32>
    %313 = tpu.concatenate %312, %171 in 1 : vector<8x16xf32>, vector<8x16xf32> -> vector<8x32xf32>
    %314 = vector.broadcast %307 : vector<1x32xf32> to vector<8x32xf32>
    %315 = arith.mulf %311, %314 : vector<8x32xf32>
    %316 = arith.addf %306, %315 : vector<8x32xf32>
    %317 = vector.broadcast %308 : vector<1x32xf32> to vector<8x32xf32>
    %318 = arith.mulf %275, %317 : vector<8x32xf32>
    %319 = arith.addf %316, %318 : vector<8x32xf32>
    %320 = vector.broadcast %309 : vector<1x32xf32> to vector<8x32xf32>
    %321 = arith.mulf %313, %320 : vector<8x32xf32>
    %322 = arith.addf %319, %321 : vector<8x32xf32>
    %c151 = arith.constant 151 : index
    %c0_111 = arith.constant 0 : index
    %323 = vector.load %arg5[%c151, %c0_111] : memref<304x128xf32, #tpu.memory_space<vmem>>, vector<1x32xf32>
    %c152 = arith.constant 152 : index
    %c0_112 = arith.constant 0 : index
    %324 = vector.load %arg5[%c152, %c0_112] : memref<304x128xf32, #tpu.memory_space<vmem>>, vector<1x32xf32>
    %c153 = arith.constant 153 : index
    %c0_113 = arith.constant 0 : index
    %325 = vector.load %arg5[%c153, %c0_113] : memref<304x128xf32, #tpu.memory_space<vmem>>, vector<1x32xf32>
    %326 = vector.extract_strided_slice %289 {offsets = [0, 0], sizes = [8, 16], strides = [1, 1]} : vector<8x32xf32> to vector<8x16xf32>
    %327 = tpu.concatenate %171, %326 in 1 : vector<8x16xf32>, vector<8x16xf32> -> vector<8x32xf32>
    %328 = vector.extract_strided_slice %289 {offsets = [0, 16], sizes = [8, 16], strides = [1, 1]} : vector<8x32xf32> to vector<8x16xf32>
    %329 = tpu.concatenate %328, %171 in 1 : vector<8x16xf32>, vector<8x16xf32> -> vector<8x32xf32>
    %330 = vector.broadcast %323 : vector<1x32xf32> to vector<8x32xf32>
    %331 = arith.mulf %327, %330 : vector<8x32xf32>
    %332 = arith.addf %322, %331 : vector<8x32xf32>
    %333 = vector.broadcast %324 : vector<1x32xf32> to vector<8x32xf32>
    %334 = arith.mulf %289, %333 : vector<8x32xf32>
    %335 = arith.addf %332, %334 : vector<8x32xf32>
    %336 = vector.broadcast %325 : vector<1x32xf32> to vector<8x32xf32>
    %337 = arith.mulf %329, %336 : vector<8x32xf32>
    %338 = arith.addf %335, %337 : vector<8x32xf32>
    %339 = vector.broadcast %276 : vector<1x32xf32> to vector<8x32xf32>
    %340 = arith.addf %338, %339 : vector<8x32xf32>
    %cst_114 = arith.constant 5.000000e-01 : f32
    %341 = vector.broadcast %cst_114 : f32 to vector<8x32xf32>
    %342 = arith.mulf %341, %340 : vector<8x32xf32>
    %cst_115 = arith.constant 4.471500e-02 : f32
    %343 = vector.broadcast %cst_115 : f32 to vector<8x32xf32>
    %344 = arith.mulf %343, %340 : vector<8x32xf32>
    %345 = arith.mulf %344, %340 : vector<8x32xf32>
    %346 = arith.mulf %345, %340 : vector<8x32xf32>
    %347 = arith.addf %340, %346 : vector<8x32xf32>
    %cst_116 = arith.constant 0.797884583 : f32
    %348 = vector.broadcast %cst_116 : f32 to vector<8x32xf32>
    %349 = arith.mulf %348, %347 : vector<8x32xf32>
    %350 = math.tanh %349 : vector<8x32xf32>
    %cst_117 = arith.constant 1.000000e+00 : f32
    %351 = vector.broadcast %cst_117 : f32 to vector<8x32xf32>
    %352 = arith.addf %351, %350 : vector<8x32xf32>
    %353 = arith.mulf %342, %352 : vector<8x32xf32>
    %354 = vector.broadcast %277 : vector<1x32xf32> to vector<8x32xf32>
    %355 = arith.mulf %353, %354 : vector<8x32xf32>
    %356 = arith.addf %275, %355 : vector<8x32xf32>
    %357 = vector.broadcast %278 : vector<1x32xf32> to vector<8x32xf32>
    %358 = arith.addf %356, %357 : vector<8x32xf32>
    %c208 = arith.constant 208 : index
    %c0_118 = arith.constant 0 : index
    %359 = vector.load %arg5[%c208, %c0_118] : memref<304x128xf32, #tpu.memory_space<vmem>>, vector<32x32xf32>
    %cst_119 = arith.constant dense<0.000000e+00> : vector<8x32xf32>
    %360 = tpu.matmul %358, %359, %cst_119 {dimension_numbers = #tpu.dot_dimension_numbers<[1], [0], [0], [1], [0, 0, 1, 1], [], []>} : vector<8x32xf32>, vector<32x32xf32>, vector<8x32xf32> -> vector<8x32xf32>
    %361 = vector.broadcast %279 : vector<1x32xf32> to vector<8x32xf32>
    %362 = arith.addf %360, %361 : vector<8x32xf32>
    %cst_120 = arith.constant 5.000000e-01 : f32
    %363 = vector.broadcast %cst_120 : f32 to vector<8x32xf32>
    %364 = arith.mulf %363, %362 : vector<8x32xf32>
    %cst_121 = arith.constant 4.471500e-02 : f32
    %365 = vector.broadcast %cst_121 : f32 to vector<8x32xf32>
    %366 = arith.mulf %365, %362 : vector<8x32xf32>
    %367 = arith.mulf %366, %362 : vector<8x32xf32>
    %368 = arith.mulf %367, %362 : vector<8x32xf32>
    %369 = arith.addf %362, %368 : vector<8x32xf32>
    %cst_122 = arith.constant 0.797884583 : f32
    %370 = vector.broadcast %cst_122 : f32 to vector<8x32xf32>
    %371 = arith.mulf %370, %369 : vector<8x32xf32>
    %372 = math.tanh %371 : vector<8x32xf32>
    %cst_123 = arith.constant 1.000000e+00 : f32
    %373 = vector.broadcast %cst_123 : f32 to vector<8x32xf32>
    %374 = arith.addf %373, %372 : vector<8x32xf32>
    %375 = arith.mulf %364, %374 : vector<8x32xf32>
    %376 = vector.broadcast %280 : vector<1x32xf32> to vector<8x32xf32>
    %377 = arith.mulf %375, %376 : vector<8x32xf32>
    %378 = vector.broadcast %281 : vector<1x32xf32> to vector<8x32xf32>
    %379 = arith.addf %377, %378 : vector<8x32xf32>
    %c240 = arith.constant 240 : index
    %c0_124 = arith.constant 0 : index
    %380 = vector.load %arg5[%c240, %c0_124] : memref<304x128xf32, #tpu.memory_space<vmem>>, vector<16x8xf32>
    %c240_125 = arith.constant 240 : index
    %c8 = arith.constant 8 : index
    %381 = vector.load %arg5[%c240_125, %c8] : memref<304x128xf32, #tpu.memory_space<vmem>>, vector<16x1xf32>
    %cst_126 = arith.constant dense<0.000000e+00> : vector<16x32xf32>
    %382 = tpu.matmul %380, %379, %cst_126 {dimension_numbers = #tpu.dot_dimension_numbers<[1], [0], [0], [1], [0, 0, 1, 1], [], []>} : vector<16x8xf32>, vector<8x32xf32>, vector<16x32xf32> -> vector<16x32xf32>
    %383 = vector.broadcast %381 : vector<16x1xf32> to vector<16x32xf32>
    %384 = arith.addf %382, %383 : vector<16x32xf32>
    %c256 = arith.constant 256 : index
    %c0_127 = arith.constant 0 : index
    %385 = vector.load %arg5[%c256, %c0_127] : memref<304x128xf32, #tpu.memory_space<vmem>>, vector<32x24xf32>
    %cst_128 = arith.constant dense<0.000000e+00> : vector<16x24xf32>
    %386 = tpu.matmul %384, %385, %cst_128 {dimension_numbers = #tpu.dot_dimension_numbers<[1], [0], [0], [1], [0, 0, 1, 1], [], []>} : vector<16x32xf32>, vector<32x24xf32>, vector<16x24xf32> -> vector<16x24xf32>
    %c296 = arith.constant 296 : index
    %c0_129 = arith.constant 0 : index
    %387 = vector.load %arg5[%c296, %c0_129] : memref<304x128xf32, #tpu.memory_space<vmem>>, vector<1x24xf32>
    %388 = vector.broadcast %387 : vector<1x24xf32> to vector<16x24xf32>
    %389 = arith.addf %386, %388 : vector<16x24xf32>
    %c0_130 = arith.constant 0 : index
    %c0_131 = arith.constant 0 : index
    %390 = vector.load %arg4[%c0_130, %c0_131] : memref<16x2xf32, #tpu.memory_space<vmem>>, vector<16x2xf32>
    %391 = vector.extract_strided_slice %390 {offsets = [0, 0], sizes = [16, 1], strides = [1, 1]} : vector<16x2xf32> to vector<16x1xf32>
    %c288 = arith.constant 288 : index
    %c0_132 = arith.constant 0 : index
    %392 = vector.load %arg5[%c288, %c0_132] : memref<304x128xf32, #tpu.memory_space<vmem>>, vector<1x24xf32>
    %393 = vector.broadcast %391 : vector<16x1xf32> to vector<16x24xf32>
    %394 = vector.broadcast %392 : vector<1x24xf32> to vector<16x24xf32>
    %395 = arith.mulf %393, %394 : vector<16x24xf32>
    %396 = arith.addf %389, %395 : vector<16x24xf32>
    %397 = vector.extract_strided_slice %390 {offsets = [0, 1], sizes = [16, 1], strides = [1, 1]} : vector<16x2xf32> to vector<16x1xf32>
    %c289 = arith.constant 289 : index
    %c0_133 = arith.constant 0 : index
    %398 = vector.load %arg5[%c289, %c0_133] : memref<304x128xf32, #tpu.memory_space<vmem>>, vector<1x24xf32>
    %399 = vector.broadcast %397 : vector<16x1xf32> to vector<16x24xf32>
    %400 = vector.broadcast %398 : vector<1x24xf32> to vector<16x24xf32>
    %401 = arith.mulf %399, %400 : vector<16x24xf32>
    %402 = arith.addf %396, %401 : vector<16x24xf32>
    %403 = vector.extract_strided_slice %402 {offsets = [0, 0], sizes = [16, 8], strides = [1, 1]} : vector<16x24xf32> to vector<16x8xf32>
    %cst_134 = arith.constant 2.000000e+01 : f32
    %404 = vector.broadcast %cst_134 : f32 to vector<16x8xf32>
    %405 = arith.cmpf ogt, %403, %404 : vector<16x8xf32>
    %406 = math.exp %403 : vector<16x8xf32>
    %407 = math.log1p %406 : vector<16x8xf32>
    %408 = arith.select %405, %403, %407 : vector<16x8xi1>, vector<16x8xf32>
    %cst_135 = arith.constant 2.000000e+00 : f32
    %409 = vector.broadcast %cst_135 : f32 to vector<16x8xf32>
    %410 = arith.addf %409, %408 : vector<16x8xf32>
    %411 = vector.extract_strided_slice %402 {offsets = [0, 8], sizes = [16, 8], strides = [1, 1]} : vector<16x24xf32> to vector<16x8xf32>
    %412 = vector.extract_strided_slice %402 {offsets = [0, 16], sizes = [16, 8], strides = [1, 1]} : vector<16x24xf32> to vector<16x8xf32>
    %cst_136 = arith.constant 2.000000e+01 : f32
    %413 = vector.broadcast %cst_136 : f32 to vector<16x8xf32>
    %414 = arith.cmpf ogt, %412, %413 : vector<16x8xf32>
    %415 = math.exp %412 : vector<16x8xf32>
    %416 = math.log1p %415 : vector<16x8xf32>
    %417 = arith.select %414, %412, %416 : vector<16x8xi1>, vector<16x8xf32>
    %418 = tpu.concatenate %36, %105 in 0 : vector<8x8xf32>, vector<8x8xf32> -> vector<16x8xf32>
    %419 = tpu.concatenate %38, %107 in 0 : vector<8x8xf32>, vector<8x8xf32> -> vector<16x8xf32>
    %cst_137 = arith.constant 0.000000e+00 : f32
    %420 = vector.broadcast %cst_137 : f32 to vector<16x88xf32>
    %421 = tpu.concatenate %410, %411, %417, %418, %419, %420 in 1 : vector<16x8xf32>, vector<16x8xf32>, vector<16x8xf32>, vector<16x8xf32>, vector<16x8xf32>, vector<16x88xf32> -> vector<16x128xf32>
    %c0_138 = arith.constant 0 : index
    %c0_139 = arith.constant 0 : index
    %422 = vector.load %arg6[%c0_138, %c0_139] : memref<16x128xf32, #tpu.memory_space<vmem>>, vector<16x128xf32>
    tpu.vector_store %arg6[%c0_138, %c0_139], %421 {strides = array<i32>} : memref<16x128xf32, #tpu.memory_space<vmem>>, vector<16x128xf32>,
    return
  }
  func.func @transform_0(%arg0: i32) -> (i32, i32) {
    %c0_i32 = arith.constant 0 : i32
    %c0_i32_0 = arith.constant 0 : i32
    %c0_i32_1 = arith.constant 0 : i32
    return %c0_i32, %c0_i32_0 : i32, i32
  }
  func.func @transform_1(%arg0: i32) -> (i32, i32) {
    %c0_i32 = arith.constant 0 : i32
    %c0_i32_0 = arith.constant 0 : i32
    %c0_i32_1 = arith.constant 0 : i32
    return %c0_i32, %c0_i32_0 : i32, i32
  }
  func.func @transform_2(%arg0: i32) -> (i32, i32) {
    %c0_i32 = arith.constant 0 : i32
    %c0_i32_0 = arith.constant 0 : i32
    %c0_i32_1 = arith.constant 0 : i32
    return %c0_i32, %c0_i32_0 : i32, i32
  }
  func.func @transform_3(%arg0: i32) -> (i32, i32) {
    %c0_i32 = arith.constant 0 : i32
    %c0_i32_0 = arith.constant 0 : i32
    %c0_i32_1 = arith.constant 0 : i32
    return %c0_i32, %c0_i32_0 : i32, i32
  }
  func.func @transform_4(%arg0: i32) -> (i32, i32) {
    %c0_i32 = arith.constant 0 : i32
    %c0_i32_0 = arith.constant 0 : i32
    %c0_i32_1 = arith.constant 0 : i32
    return %c0_i32, %c0_i32_0 : i32, i32
  }
  func.func @transform_5(%arg0: i32) -> (i32, i32) {
    %c0_i32 = arith.constant 0 : i32
    %c0_i32_0 = arith.constant 0 : i32
    %c0_i32_1 = arith.constant 0 : i32
    return %c0_i32, %c0_i32_0 : i32, i32
  }
}

</mosaic_0001>

<llo_original>
// kernel: conv_ts_mixer_forward.1
$region0: #{conv_ts_mixer_forward.1}
  #allocation0 [shape = 'u32[]', space=smem, size = 0x4, offset = 0x4, fixed_abs, tag = 'smem constant byte address 0x4 - core index']
  #allocation1 [shape = 'u32[144,128]{1,0:T(1,128)}', space=vmem, size = 0x12000, scoped, tag = 'internal scratch']
  %s0 = inlined_call_operand.vmem [shape: f32[32,8], index: 0, kind: input, shape index: {}]
  %s1 = inlined_call_operand.vmem [shape: f32[32,8], index: 1, kind: input, shape index: {}]
  %s2 = inlined_call_operand.vmem [shape: f32[32,2], index: 2, kind: input, shape index: {}]
  %s3 = inlined_call_operand.vmem [shape: f32[16,2], index: 3, kind: input, shape index: {}]
  %s4 = inlined_call_operand.hbm [shape: f32[304,128], index: 4, kind: input, shape index: {}]
  %s5 = inlined_call_operand.vmem [shape: f32[16,128], index: 5, kind: output, shape index: {}]
  %s6 = sld [smem:[#allocation0]]
  $region34: #{conv_ts_mixer_forward.1} parent=0
    _
  %s8 = ssub.s32 1, %s6
  %s9 = scalar_select 0, %s8, %s6
  $region1: #{conv_ts_mixer_forward.1} parent=0
    #allocation2 [shape = 'u8[155648]{0}', space=vmem, size = 0x26000, scoped, tag = 'input window, operand 4, single buffered']
    #allocation3 [shape = 's32[1]{0}', space=sflag, size = 0x4, scoped, tag = 'scoped memory for conv_ts_mixer_forward.1']
    %10 = vsyncpa [#allocation3], 0
    // Predicated region
    $region2: #{conv_ts_mixer_forward.1} parent=1 // pred_check
      _
    $region3: #{conv_ts_mixer_forward.1} parent=1 // pred_check_branch
      %12 = sbr.rel (0) target = $region5
    $region4: #{conv_ts_mixer_forward.1} parent=1 // pred_region
      _
    $region5: #{conv_ts_mixer_forward.1} parent=1 // pred_fallthru
      _
    // Predicated region
    $region6: #{conv_ts_mixer_forward.1} parent=1 // pred_check
      _
    $region7: #{conv_ts_mixer_forward.1} parent=1 // pred_check_branch
      %14 = sbr.rel (0) target = $region9
    $region8: #{conv_ts_mixer_forward.1} parent=1 // pred_region
      _
    $region9: #{conv_ts_mixer_forward.1} parent=1 // pred_fallthru
      _
    // Predicated region
    $region10: #{conv_ts_mixer_forward.1} parent=1 // pred_check
      _
    $region11: #{conv_ts_mixer_forward.1} parent=1 // pred_check_branch
      %16 = sbr.rel (0) target = $region13
    $region12: #{conv_ts_mixer_forward.1} parent=1 // pred_region
      _
    $region13: #{conv_ts_mixer_forward.1} parent=1 // pred_fallthru
      _
    // Predicated region
    $region14: #{conv_ts_mixer_forward.1} parent=1 // pred_check
      _
    $region15: #{conv_ts_mixer_forward.1} parent=1 // pred_check_branch
      %18 = sbr.rel (0) target = $region17
    $region16: #{conv_ts_mixer_forward.1} parent=1 // pred_region
      _
    $region17: #{conv_ts_mixer_forward.1} parent=1 // pred_fallthru
      _
    // Predicated region
    $region18: #{conv_ts_mixer_forward.1} parent=1 // pred_check
      _
    $region19: #{conv_ts_mixer_forward.1} parent=1 // pred_check_branch
      %20 = sbr.rel (0) target = $region21
    $region20: #{conv_ts_mixer_forward.1} parent=1 // pred_region
      %s22 = ssub.s32 4864, 4864
      %23 = vsyncadd [#allocation3], %s22
      %s24 = sshll.u32 [#allocation2], 4
      %s25 = int_to_ptr.vmem [resolvable:$true] %s24
      %30 = dma.hbm_to_vmem [thread:$0]  %s4, 4864, %s25, [#allocation3], 128, 128, 8
    $region21: #{conv_ts_mixer_forward.1} parent=1 // pred_fallthru
      _
    // Predicated region
    $region22: #{conv_ts_mixer_forward.1} parent=1 // pred_check
      _
    $region23: #{conv_ts_mixer_forward.1} parent=1 // pred_check_branch
      %32 = sbr.rel (0) target = $region25
    $region24: #{conv_ts_mixer_forward.1} parent=1 // pred_region
      %33 = dma.done [#allocation3], 4864
    $region25: #{conv_ts_mixer_forward.1} parent=1 // pred_fallthru
      _
    %v34 = vld [vmem:[%s0] sm:$0xff]
    %v35 = vld [vmem:[%s0 + $0x8] sm:$0xff]
    %v36 = vld [vmem:[%s1] sm:$0xff]
    %v37 = vld [vmem:[%s1 + $0x8] sm:$0xff]
    %vm38 = vcmask 64512
    %v39 = vsel %vm38, %v36, 0.0
    %v40 = vsel %vm38, %v37, 0.0
    %v41 = vadd.f32 %v39, %v40
    %v42 = vrot.slane %v41, 4
    %v43 = vadd.f32 %v41, %v42
    %v44 = vrot.slane %v43, 2
    %v45 = vadd.f32 %v43, %v44
    %v46 = vrot.slane %v45, 1
    %v47 = vadd.f32 %v45, %v46
    %v48 = vmax.f32 %v47, 1.0
    %v49 = vmul.f32 %v34, %v36
    %v50 = vmul.f32 %v35, %v37
    %v51 = vsel %vm38, %v49, 0.0
    %v52 = vsel %vm38, %v50, 0.0
    %v53 = vadd.f32 %v51, %v52
    %v54 = vrot.slane %v53, 4
    %v55 = vadd.f32 %v53, %v54
    %v56 = vrot.slane %v55, 2
    %v57 = vadd.f32 %v55, %v56
    %v58 = vrot.slane %v57, 1
    %v59 = vadd.f32 %v57, %v58
    %v60 = vrcp.pop %v48
    %v61 = vmul.f32 %v59, %v60
    %v62 = vsub.f32 %v34, %v61
    %v63 = vsub.f32 %v35, %v61
    %v64 = vmul.f32 %v62, %v36
    %v65 = vmul.f32 %v63, %v37
    %v66 = vmul.f32 %v64, %v64
    %v67 = vmul.f32 %v65, %v65
    %v68 = vsel %vm38, %v66, 0.0
    %v69 = vsel %vm38, %v67, 0.0
    %v70 = vadd.f32 %v68, %v69
    %v71 = vrot.slane %v70, 4
    %v72 = vadd.f32 %v70, %v71
    %v73 = vrot.slane %v72, 2
    %v74 = vadd.f32 %v72, %v73
    %v75 = vrot.slane %v74, 1
    %v76 = vadd.f32 %v74, %v75
    %v77 = vmul.f32 %v76, %v60
    %v78 = vadd.f32 %v77, 1e-05
    %v79 = vrsqrt.pop %v78
    %v80 = vmul.f32 %v78, %v79
    %vm81 = vcmp.eq.f32.partialorder %v78, inf
    %v82 = vsel %vm81, %v78, %v80
    %vm83 = vcmp.eq.f32.partialorder %v78, 0.0
    %v84 = vand.u32 %v78, 2147483648
    %v85 = vsel %vm83, %v84, %v82
    %v86 = vrcp.pop %v85
    %v87 = vmul.f32 1.0, %v86
    %vm88 = vcmp.gt.f32.partialorder %v61, 0.0
    %vm89 = vcmp.lt.f32.partialorder %v61, 0.0
    %v90 = vsel %vm89, -1.0, 0.0
    %v91 = vsel %vm88, 1.0, %v90
    %v92 = vand.u32 2147483647, %v61
    %v93 = vadd.f32 %v92, 1.0
    %v94 = vlog2.pop %v93
    %v95 = vmul.f32 %v94, 0.6931472
    %v96 = vmul.f32 -0.5, %v92
    %v97 = vadd.f32 %v96, 1.0
    %v98 = vmul.f32 %v97, %v92
    %v99 = vand.u32 2147483647, %v92
    %vm100 = vcmp.lt.f32.partialorder %v99, 0.0004427343
    %v101 = vsel %vm100, %v98, %v95
    %v102 = vmul.f32 %v91, %v101
    %v103 = vlog2.pop %v85
    %v104 = vmul.f32 %v103, 0.6931472
    %v105 = vld [vmem:[%s0] ss:$4 sm:$0xf]
    %v106 = vsub.f32 %v105, %v61
    %v107 = vmul.f32 %v106, %v87
    %s108 = scalar_lea.vmem %s0, 1
    %v109 = vld [vmem:[%s108] ss:$4 sm:$0xf]
    %v110 = vsub.f32 %v109, %v61
    %v111 = vmul.f32 %v110, %v87
    %s112 = scalar_lea.vmem %s0, 2
    %v113 = vld [vmem:[%s112] ss:$4 sm:$0xf]
    %v114 = vsub.f32 %v113, %v61
    %v115 = vmul.f32 %v114, %v87
    %s116 = scalar_lea.vmem %s0, 3
    %v117 = vld [vmem:[%s116] ss:$4 sm:$0xf]
    %v118 = vsub.f32 %v117, %v61
    %v119 = vmul.f32 %v118, %v87
    %v120 = vld [vmem:[%s2] ss:$4 sm:$0xf]
    %s121 = scalar_lea.vmem %s2, 1
    %v122 = vld [vmem:[%s121] ss:$4 sm:$0xf]
    %s123 = scalar_lea.vmem %s2, 2
    %v124 = vld [vmem:[%s123] ss:$4 sm:$0xf]
    %s125 = scalar_lea.vmem %s2, 3
    %v126 = vld [vmem:[%s125] ss:$4 sm:$0xf]
    %128 = vrot.lane.b32.xlu0 %v111, 8
    %v129 = vpop.permute.xlu0 %128
    %132 = vrot.lane.b32.xlu0 %v115, 16
    %v133 = vpop.permute.xlu0 %132
    %136 = vrot.lane.b32.xlu0 %v119, 24
    %v137 = vpop.permute.xlu0 %136
    %140 = vrot.lane.b32.xlu0 %v120, 32
    %v141 = vpop.permute.xlu0 %140
    %144 = vrot.lane.b32.xlu0 %v122, 34
    %v145 = vpop.permute.xlu0 %144
    %148 = vrot.lane.b32.xlu0 %v124, 36
    %v149 = vpop.permute.xlu0 %148
    %152 = vrot.lane.b32.xlu0 %v126, 38
    %v153 = vpop.permute.xlu0 %152
    %156 = vrot.lane.b32.xlu0 %v102, 40
    %v157 = vpop.permute.xlu0 %156
    %160 = vrot.lane.b32.xlu0 %v104, 48
    %v161 = vpop.permute.xlu0 %160
    %v163 = vsel %vm38, %v107, %v129
    %vm164 = vcmask 130048
    %v165 = vsel %vm164, %v163, %v133
    %vm166 = vcmask 195584
    %v167 = vsel %vm166, %v165, %v137
    %vm168 = vcmask 261120
    %v169 = vsel %vm168, %v167, %v141
    %vm170 = vcmask 277504
    %v171 = vsel %vm170, %v169, %v145
    %vm172 = vcmask 293888
    %v173 = vsel %vm172, %v171, %v149
    %vm174 = vcmask 310272
    %v175 = vsel %vm174, %v173, %v153
    %vm176 = vcmask 326656
    %v177 = vsel %vm176, %v175, %v157
    %vm178 = vcmask 392192
    %v179 = vsel %vm178, %v177, %v161
    %vm180 = vcmask 457728
    %v181 = vsel %vm180, %v179, 0.0
    %v182 = vld [vmem:[%s0 + $0x10] sm:$0xff]
    %v183 = vld [vmem:[%s0 + $0x18] sm:$0xff]
    %v184 = vld [vmem:[%s1 + $0x10] sm:$0xff]
    %v185 = vld [vmem:[%s1 + $0x18] sm:$0xff]
    %v186 = vsel %vm38, %v184, 0.0
    %v187 = vsel %vm38, %v185, 0.0
    %v188 = vadd.f32 %v186, %v187
    %v189 = vrot.slane %v188, 4
    %v190 = vadd.f32 %v188, %v189
    %v191 = vrot.slane %v190, 2
    %v192 = vadd.f32 %v190, %v191
    %v193 = vrot.slane %v192, 1
    %v194 = vadd.f32 %v192, %v193
    %v195 = vmax.f32 %v194, 1.0
    %v196 = vmul.f32 %v182, %v184
    %v197 = vmul.f32 %v183, %v185
    %v198 = vsel %vm38, %v196, 0.0
    %v199 = vsel %vm38, %v197, 0.0
    %v200 = vadd.f32 %v198, %v199
    %v201 = vrot.slane %v200, 4
    %v202 = vadd.f32 %v200, %v201
    %v203 = vrot.slane %v202, 2
    %v204 = vadd.f32 %v202, %v203
    %v205 = vrot.slane %v204, 1
    %v206 = vadd.f32 %v204, %v205
    %v207 = vrcp.pop %v195
    %v208 = vmul.f32 %v206, %v207
    %v209 = vsub.f32 %v182, %v208
    %v210 = vsub.f32 %v183, %v208
    %v211 = vmul.f32 %v209, %v184
    %v212 = vmul.f32 %v210, %v185
    %v213 = vmul.f32 %v211, %v211
    %v214 = vmul.f32 %v212, %v212
    %v215 = vsel %vm38, %v213, 0.0
    %v216 = vsel %vm38, %v214, 0.0
    %v217 = vadd.f32 %v215, %v216
    %v218 = vrot.slane %v217, 4
    %v219 = vadd.f32 %v217, %v218
    %v220 = vrot.slane %v219, 2
    %v221 = vadd.f32 %v219, %v220
    %v222 = vrot.slane %v221, 1
    %v223 = vadd.f32 %v221, %v222
    %v224 = vmul.f32 %v223, %v207
    %v225 = vadd.f32 %v224, 1e-05
    %v226 = vrsqrt.pop %v225
    %v227 = vmul.f32 %v225, %v226
    %vm228 = vcmp.eq.f32.partialorder %v225, inf
    %v229 = vsel %vm228, %v225, %v227
    %vm230 = vcmp.eq.f32.partialorder %v225, 0.0
    %v231 = vand.u32 %v225, 2147483648
    %v232 = vsel %vm230, %v231, %v229
    %v233 = vrcp.pop %v232
    %v234 = vmul.f32 1.0, %v233
    %vm235 = vcmp.gt.f32.partialorder %v208, 0.0
    %vm236 = vcmp.lt.f32.partialorder %v208, 0.0
    %v237 = vsel %vm236, -1.0, 0.0
    %v238 = vsel %vm235, 1.0, %v237
    %v239 = vand.u32 2147483647, %v208
    %v240 = vadd.f32 %v239, 1.0
    %v241 = vlog2.pop %v240
    %v242 = vmul.f32 %v241, 0.6931472
    %v243 = vmul.f32 -0.5, %v239
    %v244 = vadd.f32 %v243, 1.0
    %v245 = vmul.f32 %v244, %v239
    %v246 = vand.u32 2147483647, %v239
    %vm247 = vcmp.lt.f32.partialorder %v246, 0.0004427343
    %v248 = vsel %vm247, %v245, %v242
    %v249 = vmul.f32 %v238, %v248
    %v250 = vlog2.pop %v232
    %v251 = vmul.f32 %v250, 0.6931472
    %s252 = scalar_lea.vmem %s0, 16
    %v253 = vld [vmem:[%s252] ss:$4 sm:$0xf]
    %v254 = vsub.f32 %v253, %v208
    %v255 = vmul.f32 %v254, %v234
    %s256 = scalar_lea.vmem %s0, 17
    %v257 = vld [vmem:[%s256] ss:$4 sm:$0xf]
    %v258 = vsub.f32 %v257, %v208
    %v259 = vmul.f32 %v258, %v234
    %s260 = scalar_lea.vmem %s0, 18
    %v261 = vld [vmem:[%s260] ss:$4 sm:$0xf]
    %v262 = vsub.f32 %v261, %v208
    %v263 = vmul.f32 %v262, %v234
    %s264 = scalar_lea.vmem %s0, 19
    %v265 = vld [vmem:[%s264] ss:$4 sm:$0xf]
    %v266 = vsub.f32 %v265, %v208
    %v267 = vmul.f32 %v266, %v234
    %s268 = scalar_lea.vmem %s2, 16
    %v269 = vld [vmem:[%s268] ss:$4 sm:$0xf]
    %s270 = scalar_lea.vmem %s2, 17
    %v271 = vld [vmem:[%s270] ss:$4 sm:$0xf]
    %s272 = scalar_lea.vmem %s2, 18
    %v273 = vld [vmem:[%s272] ss:$4 sm:$0xf]
    %s274 = scalar_lea.vmem %s2, 19
    %v275 = vld [vmem:[%s274] ss:$4 sm:$0xf]
    %277 = vrot.lane.b32.xlu0 %v259, 8
    %v278 = vpop.permute.xlu0 %277
    %281 = vrot.lane.b32.xlu0 %v263, 16
    %v282 = vpop.permute.xlu0 %281
    %285 = vrot.lane.b32.xlu0 %v267, 24
    %v286 = vpop.permute.xlu0 %285
    %289 = vrot.lane.b32.xlu0 %v269, 32
    %v290 = vpop.permute.xlu0 %289
    %293 = vrot.lane.b32.xlu0 %v271, 34
    %v294 = vpop.permute.xlu0 %293
    %297 = vrot.lane.b32.xlu0 %v273, 36
    %v298 = vpop.permute.xlu0 %297
    %301 = vrot.lane.b32.xlu0 %v275, 38
    %v302 = vpop.permute.xlu0 %301
    %305 = vrot.lane.b32.xlu0 %v249, 40
    %v306 = vpop.permute.xlu0 %305
    %309 = vrot.lane.b32.xlu0 %v251, 48
    %v310 = vpop.permute.xlu0 %309
    %v312 = vsel %vm38, %v255, %v278
    %v313 = vsel %vm164, %v312, %v282
    %v314 = vsel %vm166, %v313, %v286
    %v315 = vsel %vm168, %v314, %v290
    %v316 = vsel %vm170, %v315, %v294
    %v317 = vsel %vm172, %v316, %v298
    %v318 = vsel %vm174, %v317, %v302
    %v319 = vsel %vm176, %v318, %v306
    %v320 = vsel %vm178, %v319, %v310
    %v321 = vsel %vm180, %v320, 0.0
    %v323 = vrot.slane %v321, 4
    %vm325 = vcmask 1043456
    %v326 = vsel %vm325, %v181, %v323
    %v327 = vld [vmem:[#allocation2] sm:$0xff]
    %v328 = vld [vmem:[#allocation2 + $0x8] sm:$0xff]
    %v329 = vld [vmem:[#allocation2 + $0x10] sm:$0xff]
    %v330 = vld [vmem:[#allocation2 + $0x18] sm:$0xff]
    %v331 = vld [vmem:[#allocation2 + $0x20] sm:$0xff]
    %v332 = vld [vmem:[#allocation2 + $0x28] sm:$0xff]
    %v333 = vld [vmem:[#allocation2 + $0x30] sm:$0xff]
    %v334 = vld [vmem:[#allocation2 + $0x38] sm:$0xff]
    %v335 = vld [vmem:[#allocation2 + $0x40] sm:$0xff]
    %v336 = vld [vmem:[#allocation2 + $0x48] sm:$0xff]
    %v337 = vld [vmem:[#allocation2 + $0x50] sm:$0xff]
    %v338 = vld [vmem:[#allocation2 + $0x58] sm:$0xff]
    %v339 = vld [vmem:[#allocation2 + $0x60] sm:$0xff]
    %v340 = vld [vmem:[#allocation2 + $0x68] sm:$0xff]
    %v341 = vld [vmem:[#allocation2 + $0x70] sm:$0xff]
    %v342 = vld [vmem:[#allocation2 + $0x78] sm:$0xff]
    %v343 = vld [vmem:[#allocation2 + $0x80] sm:$0x1]
    %v344 = vlaneseq
    %v345 = vshrl.u32 %v344, 7
    %v346 = vsub.s32 0, %v345
    %v347 = vrot.slane %v343, %v346
    %348 = vmatprep.subr.mxu0 0.0
    %349 = vmatpush1.msra.mxu0 %v342
    %350 = vmatprep.subr.mxu0 0.0
    %351 = vmatpush1.msra.mxu0 %v341
    %352 = vmatprep.subr.mxu0 0.0
    %353 = vmatpush1.msra.mxu0 %v340
    %354 = vmatprep.subr.mxu0 0.0
    %355 = vmatpush1.msra.mxu0 %v339
    %356 = vmatprep.subr.mxu0 0.0
    %357 = vmatpush1.msra.mxu0 %v338
    %358 = vmatprep.subr.mxu0 0.0
    %359 = vmatpush1.msra.mxu0 %v337
    %360 = vmatprep.subr.mxu0 0.0
    %361 = vmatpush1.msra.mxu0 %v336
    %362 = vmatprep.subr.mxu0 0.0
    %363 = vmatpush1.msra.mxu0 %v335
    %364 = vmatprep.subr.mxu0 0.0
    %365 = vmatpush1.msra.mxu0 %v334
    %366 = vmatprep.subr.mxu0 0.0
    %367 = vmatpush1.msra.mxu0 %v333
    %368 = vmatprep.subr.mxu0 0.0
    %369 = vmatpush1.msra.mxu0 %v332
    %370 = vmatprep.subr.mxu0 0.0
    %371 = vmatpush1.msra.mxu0 %v331
    %372 = vmatprep.subr.mxu0 0.0
    %373 = vmatpush1.msra.mxu0 %v330
    %374 = vmatprep.subr.mxu0 0.0
    %375 = vmatpush1.msra.mxu0 %v329
    %376 = vmatprep.subr.mxu0 0.0
    %377 = vmatpush1.msra.mxu0 %v328
    %378 = vmatprep.subr.mxu0 0.0
    %379 = vmatpush1.msra.mxu0 %v327
    %380 = vmatprep.subr.mxu0 0.0
    %381 = vmatpush2.msra.mxu0 0.0
    %382 = vmatprep.subr.mxu0 0.0
    %383 = vmatpush2.msra.mxu0 0.0
    %384 = vmatprep.subr.mxu0 0.0
    %385 = vmatpush2.msra.mxu0 0.0
    %386 = vmatprep.subr.mxu0 0.0
    %387 = vmatpush2.msra.mxu0 0.0
    %388 = vmatprep.subr.mxu0 0.0
    %389 = vmatpush2.msra.mxu0 0.0
    %390 = vmatprep.subr.mxu0 0.0
    %391 = vmatpush2.msra.mxu0 0.0
    %392 = vmatprep.subr.mxu0 0.0
    %393 = vmatpush2.msra.mxu0 0.0
    %394 = vmatprep.subr.mxu0 0.0
    %395 = vmatpush2.msra.mxu0 0.0
    %396 = vmatprep.subr.mxu0 0.0
    %397 = vmatpush2.msra.mxu0 0.0
    %398 = vmatprep.subr.mxu0 0.0
    %399 = vmatpush2.msra.mxu0 0.0
    %400 = vmatprep.subr.mxu0 0.0
    %401 = vmatpush2.msra.mxu0 0.0
    %402 = vmatprep.subr.mxu0 0.0
    %403 = vmatpush2.msra.mxu0 0.0
    %404 = vmatprep.subr.mxu0 0.0
    %405 = vmatpush2.msra.mxu0 0.0
    %406 = vmatprep.subr.mxu0 0.0
    %407 = vmatpush2.msra.mxu0 0.0
    %408 = vmatprep.subr.mxu0 0.0
    %409 = vmatpush2.msra.mxu0 0.0
    %410 = vmatprep.subr.mxu0 0.0
    %411 = vmatpush2.msra.mxu0 0.0
    %412 = vmatprep.mubr.f32.mxu0 0.0
    %413 = vmatmul.mubr.f32.gmra.mxu0 %v326
    %v414 = vpop.f32.mrf.mxu0
    %v415 = vadd.f32 %v347, %v414
    %v416 = vpop.f32.mrf.mxu0
    %417 = vdwg.mxu0
    %v418 = vmul.f32 %v415, 0.5
    %v419 = vmul.f32 %v415, 0.044715
    %v420 = vmul.f32 %v419, %v415
    %v421 = vmul.f32 %v420, %v415
    %v422 = vadd.f32 %v415, %v421
    %v423 = vmul.f32 %v422, 0.7978846
    %v424 = vtanh.pop %v423
    %v425 = vadd.f32 %v424, 1.0
    %v426 = vmul.f32 %v418, %v425
    %v427 = vld [vmem:[#allocation2 + $0x81] sm:$0x1]
    %v428 = vlaneseq
    %v429 = vshrl.u32 %v428, 7
    %v430 = vsub.s32 0, %v429
    %v431 = vrot.slane %v427, %v430
    %v432 = vmul.f32 %v426, %v431
    %v433 = vld [vmem:[#allocation2 + $0x82] sm:$0x1]
    %v434 = vlaneseq
    %v435 = vshrl.u32 %v434, 7
    %v436 = vsub.s32 0, %v435
    %v437 = vrot.slane %v433, %v436
    %v438 = vadd.f32 %v432, %v437
    %v439 = vlaneseq
    %v440 = vshrl.u32 %v439, 7
    %v441 = vand.u32 %v440, 3
    %vm442 = vcmp.ne.s32.totalorder %v441, 0
    %vm443 = vcmp.ne.s32.totalorder %v441, 3
    %v444 = vld [vmem:[#allocation2 + $0xa0] sm:$0x1]
    %v445 = vld [vmem:[#allocation2 + $0xa1] sm:$0x1]
    %v446 = vld [vmem:[#allocation2 + $0xa2] sm:$0x1]
    %v447 = vld [vmem:[#allocation2 + $0xa3] sm:$0x1]
    %v448 = vld [vmem:[#allocation2 + $0xa4] sm:$0x1]
    %v449 = vld [vmem:[#allocation2 + $0xa5] sm:$0x1]
    %v451 = vrot.slane %v438, 7
    %vm453 = vcmask 1040384
    %v454 = vsel %vm453, 0.0, %v451
    %v455 = vsel %vm442, %v454, 0.0
    %v456 = vrot.slane %v438, 1
    %vm458 = vcmask 1046528
    %v459 = vsel %vm458, %v456, 0.0
    %v460 = vsel %vm443, %v459, 0.0
    %v461 = vld [vmem:[#allocation2 + $0x88] sm:$0x1]
    %v462 = vld [vmem:[#allocation2 + $0x89] sm:$0x1]
    %v463 = vld [vmem:[#allocation2 + $0x8a] sm:$0x1]
    %465 = vrot.lane.b32.xlu0 %v455, 16
    %v466 = vpop.permute.xlu0 %465
    %v468 = vsel %vm164, 0.0, %v466
    %469 = vrot.lane.b32.xlu0 %v455, 112
    %v470 = vpop.permute.xlu0 %469
    %v472 = vsel %vm164, %v470, 0.0
    %v473 = vlaneseq
    %v474 = vshrl.u32 %v473, 7
    %v475 = vsub.s32 0, %v474
    %v476 = vrot.slane %v461, %v475
    %v477 = vmul.f32 %v468, %v476
    %v478 = vadd.f32 %v477, 0.0
    %v479 = vlaneseq
    %v480 = vshrl.u32 %v479, 7
    %v481 = vsub.s32 0, %v480
    %v482 = vrot.slane %v462, %v481
    %v483 = vmul.f32 %v455, %v482
    %v484 = vadd.f32 %v478, %v483
    %v485 = vlaneseq
    %v486 = vshrl.u32 %v485, 7
    %v487 = vsub.s32 0, %v486
    %v488 = vrot.slane %v463, %v487
    %v489 = vmul.f32 %v472, %v488
    %v490 = vadd.f32 %v484, %v489
    %v491 = vld [vmem:[#allocation2 + $0x8b] sm:$0x1]
    %v492 = vld [vmem:[#allocation2 + $0x8c] sm:$0x1]
    %v493 = vld [vmem:[#allocation2 + $0x8d] sm:$0x1]
    %494 = vrot.lane.b32.xlu0 %v438, 16
    %v495 = vpop.permute.xlu0 %494
    %v497 = vsel %vm164, 0.0, %v495
    %498 = vrot.lane.b32.xlu0 %v438, 112
    %v499 = vpop.permute.xlu0 %498
    %v501 = vsel %vm164, %v499, 0.0
    %v502 = vlaneseq
    %v503 = vshrl.u32 %v502, 7
    %v504 = vsub.s32 0, %v503
    %v505 = vrot.slane %v491, %v504
    %v506 = vmul.f32 %v497, %v505
    %v507 = vadd.f32 %v490, %v506
    %v508 = vlaneseq
    %v509 = vshrl.u32 %v508, 7
    %v510 = vsub.s32 0, %v509
    %v511 = vrot.slane %v492, %v510
    %v512 = vmul.f32 %v438, %v511
    %v513 = vadd.f32 %v507, %v512
    %v514 = vlaneseq
    %v515 = vshrl.u32 %v514, 7
    %v516 = vsub.s32 0, %v515
    %v517 = vrot.slane %v493, %v516
    %v518 = vmul.f32 %v501, %v517
    %v519 = vadd.f32 %v513, %v518
    %v520 = vld [vmem:[#allocation2 + $0x8e] sm:$0x1]
    %v521 = vld [vmem:[#allocation2 + $0x8f] sm:$0x1]
    %v522 = vld [vmem:[#allocation2 + $0x90] sm:$0x1]
    %524 = vrot.lane.b32.xlu0 %v460, 16
    %v525 = vpop.permute.xlu0 %524
    %v527 = vsel %vm164, 0.0, %v525
    %528 = vrot.lane.b32.xlu0 %v460, 112
    %v529 = vpop.permute.xlu0 %528
    %v531 = vsel %vm164, %v529, 0.0
    %v532 = vlaneseq
    %v533 = vshrl.u32 %v532, 7
    %v534 = vsub.s32 0, %v533
    %v535 = vrot.slane %v520, %v534
    %v536 = vmul.f32 %v527, %v535
    %v537 = vadd.f32 %v519, %v536
    %v538 = vlaneseq
    %v539 = vshrl.u32 %v538, 7
    %v540 = vsub.s32 0, %v539
    %v541 = vrot.slane %v521, %v540
    %v542 = vmul.f32 %v460, %v541
    %v543 = vadd.f32 %v537, %v542
    %v544 = vlaneseq
    %v545 = vshrl.u32 %v544, 7
    %v546 = vsub.s32 0, %v545
    %v547 = vrot.slane %v522, %v546
    %v548 = vmul.f32 %v531, %v547
    %v549 = vadd.f32 %v543, %v548
    %v550 = vlaneseq
    %v551 = vshrl.u32 %v550, 7
    %v552 = vsub.s32 0, %v551
    %v553 = vrot.slane %v444, %v552
    %v554 = vadd.f32 %v549, %v553
    %v555 = vmul.f32 %v554, 0.5
    %v556 = vmul.f32 %v554, 0.044715
    %v557 = vmul.f32 %v556, %v554
    %v558 = vmul.f32 %v557, %v554
    %v559 = vadd.f32 %v554, %v558
    %v560 = vmul.f32 %v559, 0.7978846
    %v561 = vtanh.pop %v560
    %v562 = vadd.f32 %v561, 1.0
    %v563 = vmul.f32 %v555, %v562
    %v564 = vlaneseq
    %v565 = vshrl.u32 %v564, 7
    %v566 = vsub.s32 0, %v565
    %v567 = vrot.slane %v445, %v566
    %v568 = vmul.f32 %v563, %v567
    %v569 = vadd.f32 %v438, %v568
    %v570 = vlaneseq
    %v571 = vshrl.u32 %v570, 7
    %v572 = vsub.s32 0, %v571
    %v573 = vrot.slane %v446, %v572
    %v574 = vadd.f32 %v569, %v573
    %v575 = vld [vmem:[#allocation2 + $0xb0] sm:$0xff]
    %v576 = vld [vmem:[#allocation2 + $0xb8] sm:$0xff]
    %v577 = vld [vmem:[#allocation2 + $0xc0] sm:$0xff]
    %v578 = vld [vmem:[#allocation2 + $0xc8] sm:$0xff]
    %v579 = vlaneseq
    %v580 = vshrl.u32 %v579, 7
    %v581 = vsub.s32 0, %v580
    %v582 = vrot.slane %v447, %v581
    %v584 = vsel %vm168, %v574, 0
    %586 = vmatprep.subr.mxu0 0.0
    %587 = vmatpush1.msra.mxu0 0.0
    %588 = vmatprep.subr.mxu0 0.0
    %589 = vmatpush1.msra.mxu0 0.0
    %590 = vmatprep.subr.mxu0 0.0
    %591 = vmatpush1.msra.mxu0 0.0
    %592 = vmatprep.subr.mxu0 0.0
    %593 = vmatpush1.msra.mxu0 0.0
    %594 = vmatprep.subr.mxu0 0.0
    %595 = vmatpush1.msra.mxu0 0.0
    %596 = vmatprep.subr.mxu0 0.0
    %597 = vmatpush1.msra.mxu0 0.0
    %598 = vmatprep.subr.mxu0 0.0
    %599 = vmatpush1.msra.mxu0 0.0
    %600 = vmatprep.subr.mxu0 0.0
    %601 = vmatpush1.msra.mxu0 0.0
    %602 = vmatprep.subr.mxu0 0.0
    %603 = vmatpush1.msra.mxu0 0.0
    %604 = vmatprep.subr.mxu0 0.0
    %605 = vmatpush1.msra.mxu0 0.0
    %606 = vmatprep.subr.mxu0 0.0
    %607 = vmatpush1.msra.mxu0 0.0
    %608 = vmatprep.subr.mxu0 0.0
    %609 = vmatpush1.msra.mxu0 0.0
    %610 = vmatprep.subr.mxu0 0.0
    %611 = vmatpush1.msra.mxu0 %v578
    %612 = vmatprep.subr.mxu0 0.0
    %613 = vmatpush1.msra.mxu0 %v577
    %614 = vmatprep.subr.mxu0 0.0
    %615 = vmatpush1.msra.mxu0 %v576
    %616 = vmatprep.subr.mxu0 0.0
    %617 = vmatpush1.msra.mxu0 %v575
    %618 = vmatprep.subr.mxu0 0.0
    %619 = vmatpush2.msra.mxu0 0.0
    %620 = vmatprep.subr.mxu0 0.0
    %621 = vmatpush2.msra.mxu0 0.0
    %622 = vmatprep.subr.mxu0 0.0
    %623 = vmatpush2.msra.mxu0 0.0
    %624 = vmatprep.subr.mxu0 0.0
    %625 = vmatpush2.msra.mxu0 0.0
    %626 = vmatprep.subr.mxu0 0.0
    %627 = vmatpush2.msra.mxu0 0.0
    %628 = vmatprep.subr.mxu0 0.0
    %629 = vmatpush2.msra.mxu0 0.0
    %630 = vmatprep.subr.mxu0 0.0
    %631 = vmatpush2.msra.mxu0 0.0
    %632 = vmatprep.subr.mxu0 0.0
    %633 = vmatpush2.msra.mxu0 0.0
    %634 = vmatprep.subr.mxu0 0.0
    %635 = vmatpush2.msra.mxu0 0.0
    %636 = vmatprep.subr.mxu0 0.0
    %637 = vmatpush2.msra.mxu0 0.0
    %638 = vmatprep.subr.mxu0 0.0
    %639 = vmatpush2.msra.mxu0 0.0
    %640 = vmatprep.subr.mxu0 0.0
    %641 = vmatpush2.msra.mxu0 0.0
    %642 = vmatprep.subr.mxu0 0.0
    %643 = vmatpush2.msra.mxu0 0.0
    %644 = vmatprep.subr.mxu0 0.0
    %645 = vmatpush2.msra.mxu0 0.0
    %646 = vmatprep.subr.mxu0 0.0
    %647 = vmatpush2.msra.mxu0 0.0
    %648 = vmatprep.subr.mxu0 0.0
    %649 = vmatpush2.msra.mxu0 0.0
    %650 = vmatprep.mubr.f32.mxu0 0.0
    %651 = vmatmul.mubr.f32.gmra.mxu0 %v584
    %v652 = vpop.f32.mrf.mxu0
    %v653 = vadd.f32 %v582, %v652
    %v654 = vpop.f32.mrf.mxu0
    %655 = vdwg.mxu0
    %v656 = vmul.f32 %v653, 0.5
    %v657 = vmul.f32 %v653, 0.044715
    %v658 = vmul.f32 %v657, %v653
    %v659 = vmul.f32 %v658, %v653
    %v660 = vadd.f32 %v653, %v659
    %v661 = vmul.f32 %v660, 0.7978846
    %v662 = vtanh.pop %v661
    %v663 = vadd.f32 %v662, 1.0
    %v664 = vmul.f32 %v656, %v663
    %v665 = vlaneseq
    %v666 = vshrl.u32 %v665, 7
    %v667 = vsub.s32 0, %v666
    %v668 = vrot.slane %v448, %v667
    %v669 = vmul.f32 %v664, %v668
    %v670 = vlaneseq
    %v671 = vshrl.u32 %v670, 7
    %v672 = vsub.s32 0, %v671
    %v673 = vrot.slane %v449, %v672
    %v674 = vadd.f32 %v669, %v673
    %v675 = vld [vmem:[#allocation2 + $0xa6] sm:$0x1]
    %v676 = vld [vmem:[#allocation2 + $0xa7] sm:$0x1]
    %v677 = vld [vmem:[#allocation2 + $0xa8] sm:$0x1]
    %v678 = vld [vmem:[#allocation2 + $0xa9] sm:$0x1]
    %v679 = vld [vmem:[#allocation2 + $0xaa] sm:$0x1]
    %v680 = vld [vmem:[#allocation2 + $0xab] sm:$0x1]
    %v682 = vrot.slane %v674, 7
    %v684 = vsel %vm453, 0.0, %v682
    %v685 = vsel %vm442, %v684, 0.0
    %v686 = vrot.slane %v674, 1
    %v688 = vsel %vm458, %v686, 0.0
    %v689 = vsel %vm443, %v688, 0.0
    %v690 = vld [vmem:[#allocation2 + $0x91] sm:$0x1]
    %v691 = vld [vmem:[#allocation2 + $0x92] sm:$0x1]
    %v692 = vld [vmem:[#allocation2 + $0x93] sm:$0x1]
    %694 = vrot.lane.b32.xlu0 %v685, 16
    %v695 = vpop.permute.xlu0 %694
    %v697 = vsel %vm164, 0.0, %v695
    %698 = vrot.lane.b32.xlu0 %v685, 112
    %v699 = vpop.permute.xlu0 %698
    %v701 = vsel %vm164, %v699, 0.0
    %v702 = vlaneseq
    %v703 = vshrl.u32 %v702, 7
    %v704 = vsub.s32 0, %v703
    %v705 = vrot.slane %v690, %v704
    %v706 = vmul.f32 %v697, %v705
    %v707 = vadd.f32 %v706, 0.0
    %v708 = vlaneseq
    %v709 = vshrl.u32 %v708, 7
    %v710 = vsub.s32 0, %v709
    %v711 = vrot.slane %v691, %v710
    %v712 = vmul.f32 %v685, %v711
    %v713 = vadd.f32 %v707, %v712
    %v714 = vlaneseq
    %v715 = vshrl.u32 %v714, 7
    %v716 = vsub.s32 0, %v715
    %v717 = vrot.slane %v692, %v716
    %v718 = vmul.f32 %v701, %v717
    %v719 = vadd.f32 %v713, %v718
    %v720 = vld [vmem:[#allocation2 + $0x94] sm:$0x1]
    %v721 = vld [vmem:[#allocation2 + $0x95] sm:$0x1]
    %v722 = vld [vmem:[#allocation2 + $0x96] sm:$0x1]
    %723 = vrot.lane.b32.xlu0 %v674, 16
    %v724 = vpop.permute.xlu0 %723
    %v726 = vsel %vm164, 0.0, %v724
    %727 = vrot.lane.b32.xlu0 %v674, 112
    %v728 = vpop.permute.xlu0 %727
    %v730 = vsel %vm164, %v728, 0.0
    %v731 = vlaneseq
    %v732 = vshrl.u32 %v731, 7
    %v733 = vsub.s32 0, %v732
    %v734 = vrot.slane %v720, %v733
    %v735 = vmul.f32 %v726, %v734
    %v736 = vadd.f32 %v719, %v735
    %v737 = vlaneseq
    %v738 = vshrl.u32 %v737, 7
    %v739 = vsub.s32 0, %v738
    %v740 = vrot.slane %v721, %v739
    %v741 = vmul.f32 %v674, %v740
    %v742 = vadd.f32 %v736, %v741
    %v743 = vlaneseq
    %v744 = vshrl.u32 %v743, 7
    %v745 = vsub.s32 0, %v744
    %v746 = vrot.slane %v722, %v745
    %v747 = vmul.f32 %v730, %v746
    %v748 = vadd.f32 %v742, %v747
    %v749 = vld [vmem:[#allocation2 + $0x97] sm:$0x1]
    %v750 = vld [vmem:[#allocation2 + $0x98] sm:$0x1]
    %v751 = vld [vmem:[#allocation2 + $0x99] sm:$0x1]
    %753 = vrot.lane.b32.xlu0 %v689, 16
    %v754 = vpop.permute.xlu0 %753
    %v756 = vsel %vm164, 0.0, %v754
    %757 = vrot.lane.b32.xlu0 %v689, 112
    %v758 = vpop.permute.xlu0 %757
    %v760 = vsel %vm164, %v758, 0.0
    %v761 = vlaneseq
    %v762 = vshrl.u32 %v761, 7
    %v763 = vsub.s32 0, %v762
    %v764 = vrot.slane %v749, %v763
    %v765 = vmul.f32 %v756, %v764
    %v766 = vadd.f32 %v748, %v765
    %v767 = vlaneseq
    %v768 = vshrl.u32 %v767, 7
    %v769 = vsub.s32 0, %v768
    %v770 = vrot.slane %v750, %v769
    %v771 = vmul.f32 %v689, %v770
    %v772 = vadd.f32 %v766, %v771
    %v773 = vlaneseq
    %v774 = vshrl.u32 %v773, 7
    %v775 = vsub.s32 0, %v774
    %v776 = vrot.slane %v751, %v775
    %v777 = vmul.f32 %v760, %v776
    %v778 = vadd.f32 %v772, %v777
    %v779 = vlaneseq
    %v780 = vshrl.u32 %v779, 7
    %v781 = vsub.s32 0, %v780
    %v782 = vrot.slane %v675, %v781
    %v783 = vadd.f32 %v778, %v782
    %v784 = vmul.f32 %v783, 0.5
    %v785 = vmul.f32 %v783, 0.044715
    %v786 = vmul.f32 %v785, %v783
    %v787 = vmul.f32 %v786, %v783
    %v788 = vadd.f32 %v783, %v787
    %v789 = vmul.f32 %v788, 0.7978846
    %v790 = vtanh.pop %v789
    %v791 = vadd.f32 %v790, 1.0
    %v792 = vmul.f32 %v784, %v791
    %v793 = vlaneseq
    %v794 = vshrl.u32 %v793, 7
    %v795 = vsub.s32 0, %v794
    %v796 = vrot.slane %v676, %v795
    %v797 = vmul.f32 %v792, %v796
    %v798 = vadd.f32 %v674, %v797
    %v799 = vlaneseq
    %v800 = vshrl.u32 %v799, 7
    %v801 = vsub.s32 0, %v800
    %v802 = vrot.slane %v677, %v801
    %v803 = vadd.f32 %v798, %v802
    %v804 = vld [vmem:[#allocation2 + $0xd0] sm:$0xff]
    %v805 = vld [vmem:[#allocation2 + $0xd8] sm:$0xff]
    %v806 = vld [vmem:[#allocation2 + $0xe0] sm:$0xff]
    %v807 = vld [vmem:[#allocation2 + $0xe8] sm:$0xff]
    %v808 = vlaneseq
    %v809 = vshrl.u32 %v808, 7
    %v810 = vsub.s32 0, %v809
    %v811 = vrot.slane %v678, %v810
    %v813 = vsel %vm168, %v803, 0
    %815 = vmatprep.subr.mxu0 0.0
    %816 = vmatpush1.msra.mxu0 0.0
    %817 = vmatprep.subr.mxu0 0.0
    %818 = vmatpush1.msra.mxu0 0.0
    %819 = vmatprep.subr.mxu0 0.0
    %820 = vmatpush1.msra.mxu0 0.0
    %821 = vmatprep.subr.mxu0 0.0
    %822 = vmatpush1.msra.mxu0 0.0
    %823 = vmatprep.subr.mxu0 0.0
    %824 = vmatpush1.msra.mxu0 0.0
    %825 = vmatprep.subr.mxu0 0.0
    %826 = vmatpush1.msra.mxu0 0.0
    %827 = vmatprep.subr.mxu0 0.0
    %828 = vmatpush1.msra.mxu0 0.0
    %829 = vmatprep.subr.mxu0 0.0
    %830 = vmatpush1.msra.mxu0 0.0
    %831 = vmatprep.subr.mxu0 0.0
    %832 = vmatpush1.msra.mxu0 0.0
    %833 = vmatprep.subr.mxu0 0.0
    %834 = vmatpush1.msra.mxu0 0.0
    %835 = vmatprep.subr.mxu0 0.0
    %836 = vmatpush1.msra.mxu0 0.0
    %837 = vmatprep.subr.mxu0 0.0
    %838 = vmatpush1.msra.mxu0 0.0
    %839 = vmatprep.subr.mxu0 0.0
    %840 = vmatpush1.msra.mxu0 %v807
    %841 = vmatprep.subr.mxu0 0.0
    %842 = vmatpush1.msra.mxu0 %v806
    %843 = vmatprep.subr.mxu0 0.0
    %844 = vmatpush1.msra.mxu0 %v805
    %845 = vmatprep.subr.mxu0 0.0
    %846 = vmatpush1.msra.mxu0 %v804
    %847 = vmatprep.subr.mxu0 0.0
    %848 = vmatpush2.msra.mxu0 0.0
    %849 = vmatprep.subr.mxu0 0.0
    %850 = vmatpush2.msra.mxu0 0.0
    %851 = vmatprep.subr.mxu0 0.0
    %852 = vmatpush2.msra.mxu0 0.0
    %853 = vmatprep.subr.mxu0 0.0
    %854 = vmatpush2.msra.mxu0 0.0
    %855 = vmatprep.subr.mxu0 0.0
    %856 = vmatpush2.msra.mxu0 0.0
    %857 = vmatprep.subr.mxu0 0.0
    %858 = vmatpush2.msra.mxu0 0.0
    %859 = vmatprep.subr.mxu0 0.0
    %860 = vmatpush2.msra.mxu0 0.0
    %861 = vmatprep.subr.mxu0 0.0
    %862 = vmatpush2.msra.mxu0 0.0
    %863 = vmatprep.subr.mxu0 0.0
    %864 = vmatpush2.msra.mxu0 0.0
    %865 = vmatprep.subr.mxu0 0.0
    %866 = vmatpush2.msra.mxu0 0.0
    %867 = vmatprep.subr.mxu0 0.0
    %868 = vmatpush2.msra.mxu0 0.0
    %869 = vmatprep.subr.mxu0 0.0
    %870 = vmatpush2.msra.mxu0 0.0
    %871 = vmatprep.subr.mxu0 0.0
    %872 = vmatpush2.msra.mxu0 0.0
    %873 = vmatprep.subr.mxu0 0.0
    %874 = vmatpush2.msra.mxu0 0.0
    %875 = vmatprep.subr.mxu0 0.0
    %876 = vmatpush2.msra.mxu0 0.0
    %877 = vmatprep.subr.mxu0 0.0
    %878 = vmatpush2.msra.mxu0 0.0
    %879 = vmatprep.mubr.f32.mxu0 0.0
    %880 = vmatmul.mubr.f32.gmra.mxu0 %v813
    %v881 = vpop.f32.mrf.mxu0
    %v882 = vadd.f32 %v811, %v881
    %v883 = vpop.f32.mrf.mxu0
    %884 = vdwg.mxu0
    %v885 = vmul.f32 %v882, 0.5
    %v886 = vmul.f32 %v882, 0.044715
    %v887 = vmul.f32 %v886, %v882
    %v888 = vmul.f32 %v887, %v882
    %v889 = vadd.f32 %v882, %v888
    %v890 = vmul.f32 %v889, 0.7978846
    %v891 = vtanh.pop %v890
    %v892 = vadd.f32 %v891, 1.0
    %v893 = vmul.f32 %v885, %v892
    %v894 = vlaneseq
    %v895 = vshrl.u32 %v894, 7
    %v896 = vsub.s32 0, %v895
    %v897 = vrot.slane %v679, %v896
    %v898 = vmul.f32 %v893, %v897
    %v899 = vlaneseq
    %v900 = vshrl.u32 %v899, 7
    %v901 = vsub.s32 0, %v900
    %v902 = vrot.slane %v680, %v901
    %v903 = vadd.f32 %v898, %v902
    %v904 = vld [vmem:[#allocation2 + $0xf0] sm:$0xff]
    %v905 = vld [vmem:[#allocation2 + $0xf8] sm:$0xff]
    %907 = vset.pattern.permute.xlu0 8
    %908 = vperm.xlu0 %907, %v904
    %v909 = vpop.permute.xlu0 %908
    %912 = vset.pattern.permute.xlu0 8
    %913 = vperm.xlu0 %912, %v905
    %v914 = vpop.permute.xlu0 %913
    %v916 = vsel %vm38, %v904, 0
    %v918 = vsel %vm38, %v905, 0
    %920 = vmatprep.subr.mxu0 0.0
    %921 = vmatpush1.msra.mxu0 0.0
    %922 = vmatprep.subr.mxu0 0.0
    %923 = vmatpush1.msra.mxu0 0.0
    %924 = vmatprep.subr.mxu0 0.0
    %925 = vmatpush1.msra.mxu0 0.0
    %926 = vmatprep.subr.mxu0 0.0
    %927 = vmatpush1.msra.mxu0 0.0
    %928 = vmatprep.subr.mxu0 0.0
    %929 = vmatpush1.msra.mxu0 0.0
    %930 = vmatprep.subr.mxu0 0.0
    %931 = vmatpush1.msra.mxu0 0.0
    %932 = vmatprep.subr.mxu0 0.0
    %933 = vmatpush1.msra.mxu0 0.0
    %934 = vmatprep.subr.mxu0 0.0
    %935 = vmatpush1.msra.mxu0 0.0
    %936 = vmatprep.subr.mxu0 0.0
    %937 = vmatpush1.msra.mxu0 0.0
    %938 = vmatprep.subr.mxu0 0.0
    %939 = vmatpush1.msra.mxu0 0.0
    %940 = vmatprep.subr.mxu0 0.0
    %941 = vmatpush1.msra.mxu0 0.0
    %942 = vmatprep.subr.mxu0 0.0
    %943 = vmatpush1.msra.mxu0 0.0
    %944 = vmatprep.subr.mxu0 0.0
    %945 = vmatpush1.msra.mxu0 0.0
    %946 = vmatprep.subr.mxu0 0.0
    %947 = vmatpush1.msra.mxu0 0.0
    %948 = vmatprep.subr.mxu0 0.0
    %949 = vmatpush1.msra.mxu0 0.0
    %950 = vmatprep.subr.mxu0 0.0
    %951 = vmatpush1.msra.mxu0 %v903
    %952 = vmatprep.subr.mxu0 0.0
    %953 = vmatpush2.msra.mxu0 0.0
    %954 = vmatprep.subr.mxu0 0.0
    %955 = vmatpush2.msra.mxu0 0.0
    %956 = vmatprep.subr.mxu0 0.0
    %957 = vmatpush2.msra.mxu0 0.0
    %958 = vmatprep.subr.mxu0 0.0
    %959 = vmatpush2.msra.mxu0 0.0
    %960 = vmatprep.subr.mxu0 0.0
    %961 = vmatpush2.msra.mxu0 0.0
    %962 = vmatprep.subr.mxu0 0.0
    %963 = vmatpush2.msra.mxu0 0.0
    %964 = vmatprep.subr.mxu0 0.0
    %965 = vmatpush2.msra.mxu0 0.0
    %966 = vmatprep.subr.mxu0 0.0
    %967 = vmatpush2.msra.mxu0 0.0
    %968 = vmatprep.subr.mxu0 0.0
    %969 = vmatpush2.msra.mxu0 0.0
    %970 = vmatprep.subr.mxu0 0.0
    %971 = vmatpush2.msra.mxu0 0.0
    %972 = vmatprep.subr.mxu0 0.0
    %973 = vmatpush2.msra.mxu0 0.0
    %974 = vmatprep.subr.mxu0 0.0
    %975 = vmatpush2.msra.mxu0 0.0
    %976 = vmatprep.subr.mxu0 0.0
    %977 = vmatpush2.msra.mxu0 0.0
    %978 = vmatprep.subr.mxu0 0.0
    %979 = vmatpush2.msra.mxu0 0.0
    %980 = vmatprep.subr.mxu0 0.0
    %981 = vmatpush2.msra.mxu0 0.0
    %982 = vmatprep.subr.mxu0 0.0
    %983 = vmatpush2.msra.mxu0 0.0
    %984 = vmatprep.mubr.f32.mxu0 0.0
    %985 = vmatmul.mubr.f32.gmra.mxu0 %v916
    %v986 = vpop.f32.mrf.mxu0
    %v987 = vadd.f32 %v909, %v986
    %v988 = vpop.f32.mrf.mxu0
    %989 = vmatprep.mubr.f32.mxu0 0.0
    %990 = vmatmul.mubr.f32.gmra.mxu0 %v918
    %v991 = vpop.f32.mrf.mxu0
    %v992 = vadd.f32 %v914, %v991
    %v993 = vpop.f32.mrf.mxu0
    %994 = vdwg.mxu0
    %v995 = vld [vmem:[#allocation2 + $0x100] sm:$0xff]
    %v996 = vld [vmem:[#allocation2 + $0x108] sm:$0xff]
    %v997 = vld [vmem:[#allocation2 + $0x110] sm:$0xff]
    %v998 = vld [vmem:[#allocation2 + $0x118] sm:$0xff]
    %v999 = vld [vmem:[#allocation2 + $0x128] sm:$0x1]
    %v1000 = vlaneseq
    %v1001 = vshrl.u32 %v1000, 7
    %v1002 = vsub.s32 0, %v1001
    %v1003 = vrot.slane %v999, %v1002
    %v1005 = vsel %vm168, %v987, 0
    %v1008 = vsel %vm168, %v992, 0
    %1010 = vmatprep.subr.mxu0 0.0
    %1011 = vmatpush1.msra.mxu0 0.0
    %1012 = vmatprep.subr.mxu0 0.0
    %1013 = vmatpush1.msra.mxu0 0.0
    %1014 = vmatprep.subr.mxu0 0.0
    %1015 = vmatpush1.msra.mxu0 0.0
    %1016 = vmatprep.subr.mxu0 0.0
    %1017 = vmatpush1.msra.mxu0 0.0
    %1018 = vmatprep.subr.mxu0 0.0
    %1019 = vmatpush1.msra.mxu0 0.0
    %1020 = vmatprep.subr.mxu0 0.0
    %1021 = vmatpush1.msra.mxu0 0.0
    %1022 = vmatprep.subr.mxu0 0.0
    %1023 = vmatpush1.msra.mxu0 0.0
    %1024 = vmatprep.subr.mxu0 0.0
    %1025 = vmatpush1.msra.mxu0 0.0
    %1026 = vmatprep.subr.mxu0 0.0
    %1027 = vmatpush1.msra.mxu0 0.0
    %1028 = vmatprep.subr.mxu0 0.0
    %1029 = vmatpush1.msra.mxu0 0.0
    %1030 = vmatprep.subr.mxu0 0.0
    %1031 = vmatpush1.msra.mxu0 0.0
    %1032 = vmatprep.subr.mxu0 0.0
    %1033 = vmatpush1.msra.mxu0 0.0
    %1034 = vmatprep.subr.mxu0 0.0
    %1035 = vmatpush1.msra.mxu0 %v998
    %1036 = vmatprep.subr.mxu0 0.0
    %1037 = vmatpush1.msra.mxu0 %v997
    %1038 = vmatprep.subr.mxu0 0.0
    %1039 = vmatpush1.msra.mxu0 %v996
    %1040 = vmatprep.subr.mxu0 0.0
    %1041 = vmatpush1.msra.mxu0 %v995
    %1042 = vmatprep.subr.mxu0 0.0
    %1043 = vmatpush2.msra.mxu0 0.0
    %1044 = vmatprep.subr.mxu0 0.0
    %1045 = vmatpush2.msra.mxu0 0.0
    %1046 = vmatprep.subr.mxu0 0.0
    %1047 = vmatpush2.msra.mxu0 0.0
    %1048 = vmatprep.subr.mxu0 0.0
    %1049 = vmatpush2.msra.mxu0 0.0
    %1050 = vmatprep.subr.mxu0 0.0
    %1051 = vmatpush2.msra.mxu0 0.0
    %1052 = vmatprep.subr.mxu0 0.0
    %1053 = vmatpush2.msra.mxu0 0.0
    %1054 = vmatprep.subr.mxu0 0.0
    %1055 = vmatpush2.msra.mxu0 0.0
    %1056 = vmatprep.subr.mxu0 0.0
    %1057 = vmatpush2.msra.mxu0 0.0
    %1058 = vmatprep.subr.mxu0 0.0
    %1059 = vmatpush2.msra.mxu0 0.0
    %1060 = vmatprep.subr.mxu0 0.0
    %1061 = vmatpush2.msra.mxu0 0.0
    %1062 = vmatprep.subr.mxu0 0.0
    %1063 = vmatpush2.msra.mxu0 0.0
    %1064 = vmatprep.subr.mxu0 0.0
    %1065 = vmatpush2.msra.mxu0 0.0
    %1066 = vmatprep.subr.mxu0 0.0
    %1067 = vmatpush2.msra.mxu0 0.0
    %1068 = vmatprep.subr.mxu0 0.0
    %1069 = vmatpush2.msra.mxu0 0.0
    %1070 = vmatprep.subr.mxu0 0.0
    %1071 = vmatpush2.msra.mxu0 0.0
    %1072 = vmatprep.subr.mxu0 0.0
    %1073 = vmatpush2.msra.mxu0 0.0
    %1074 = vmatprep.mubr.f32.mxu0 0.0
    %1075 = vmatmul.mubr.f32.gmra.mxu0 %v1005
    %v1076 = vpop.f32.mrf.mxu0
    %v1077 = vadd.f32 %v1003, %v1076
    %v1078 = vpop.f32.mrf.mxu0
    %1079 = vmatprep.mubr.f32.mxu0 0.0
    %1080 = vmatmul.mubr.f32.gmra.mxu0 %v1008
    %v1081 = vpop.f32.mrf.mxu0
    %v1082 = vadd.f32 %v1003, %v1081
    %v1083 = vpop.f32.mrf.mxu0
    %1084 = vdwg.mxu0
    %v1085 = vld [vmem:[%s3] sm:$0xff]
    %v1086 = vld [vmem:[%s3 + $0x8] sm:$0xff]
    %v1087 = vld [vmem:[#allocation2 + $0x120] sm:$0x1]
    %1089 = vset.pattern.permute.xlu0 0
    %1090 = vperm.xlu0 %1089, %v1085
    %v1091 = vpop.permute.xlu0 %1090
    %1094 = vset.pattern.permute.xlu0 0
    %1095 = vperm.xlu0 %1094, %v1086
    %v1096 = vpop.permute.xlu0 %1095
    %v1098 = vlaneseq
    %v1099 = vshrl.u32 %v1098, 7
    %v1100 = vsub.s32 0, %v1099
    %v1101 = vrot.slane %v1087, %v1100
    %v1102 = vmul.f32 %v1091, %v1101
    %v1103 = vmul.f32 %v1096, %v1101
    %v1104 = vadd.f32 %v1077, %v1102
    %v1105 = vadd.f32 %v1082, %v1103
    %v1106 = vld [vmem:[#allocation2 + $0x121] sm:$0x1]
    %1107 = vset.pattern.permute.xlu0 1
    %1108 = vperm.xlu0 %1107, %v1085
    %v1109 = vpop.permute.xlu0 %1108
    %1111 = vset.pattern.permute.xlu0 1
    %1112 = vperm.xlu0 %1111, %v1086
    %v1113 = vpop.permute.xlu0 %1112
    %v1115 = vlaneseq
    %v1116 = vshrl.u32 %v1115, 7
    %v1117 = vsub.s32 0, %v1116
    %v1118 = vrot.slane %v1106, %v1117
    %v1119 = vmul.f32 %v1109, %v1118
    %v1120 = vmul.f32 %v1113, %v1118
    %v1121 = vadd.f32 %v1104, %v1119
    %v1122 = vadd.f32 %v1105, %v1120
    %vm1123 = vcmp.gt.f32.partialorder %v1121, 20.0
    %vm1124 = vcmp.gt.f32.partialorder %v1122, 20.0
    %v1125 = vmul.f32 %v1121, 1.442695
    %v1126 = vpow.pop %v1125
    %v1127 = vmul.f32 %v1122, 1.442695
    %v1128 = vpow.pop %v1127
    %v1129 = vadd.f32 %v1126, 1.0
    %v1130 = vlog2.pop %v1129
    %v1131 = vmul.f32 %v1130, 0.6931472
    %v1132 = vmul.f32 -0.5, %v1126
    %v1133 = vadd.f32 %v1132, 1.0
    %v1134 = vmul.f32 %v1133, %v1126
    %v1135 = vand.u32 2147483647, %v1126
    %vm1136 = vcmp.lt.f32.partialorder %v1135, 0.0004427343
    %v1137 = vsel %vm1136, %v1134, %v1131
    %v1138 = vadd.f32 %v1128, 1.0
    %v1139 = vlog2.pop %v1138
    %v1140 = vmul.f32 %v1139, 0.6931472
    %v1141 = vmul.f32 -0.5, %v1128
    %v1142 = vadd.f32 %v1141, 1.0
    %v1143 = vmul.f32 %v1142, %v1128
    %v1144 = vand.u32 2147483647, %v1128
    %vm1145 = vcmp.lt.f32.partialorder %v1144, 0.0004427343
    %v1146 = vsel %vm1145, %v1143, %v1140
    %v1147 = vsel %vm1123, %v1121, %v1137
    %v1148 = vsel %vm1124, %v1122, %v1146
    %v1149 = vadd.f32 %v1147, 2.0
    %v1150 = vadd.f32 %v1148, 2.0
    %1153 = vrot.lane.b32.xlu0 %v61, 24
    %v1154 = vpop.permute.xlu0 %1153
    %1155 = vrot.lane.b32.xlu0 %v208, 24
    %v1156 = vpop.permute.xlu0 %1155
    %1161 = vrot.lane.b32.xlu0 %v85, 32
    %v1162 = vpop.permute.xlu0 %1161
    %1163 = vrot.lane.b32.xlu0 %v232, 32
    %v1164 = vpop.permute.xlu0 %1163
    %v1167 = vsel %vm38, %v1149, %v1121
    %v1168 = vsel %vm38, %v1150, %v1122
    %v1169 = vsel %vm164, %v1167, %v1147
    %v1170 = vsel %vm164, %v1168, %v1148
    %v1171 = vsel %vm166, %v1169, %v1154
    %v1172 = vsel %vm166, %v1170, %v1156
    %v1173 = vsel %vm168, %v1171, %v1162
    %v1174 = vsel %vm168, %v1172, %v1164
    %v1175 = vsel %vm176, %v1173, 0.0
    %v1176 = vsel %vm176, %v1174, 0.0
    %1177 = vst [vmem:[%s5] sm:$0xff] %v1175
    %1178 = vst [vmem:[%s5 + $0x8] sm:$0xff] %v1176
    // Predicated region
    $region26: #{conv_ts_mixer_forward.1} parent=1 // pred_check
      _
    $region27: #{conv_ts_mixer_forward.1} parent=1 // pred_check_branch
      %1180 = sbr.rel (0) target = $region29
    $region28: #{conv_ts_mixer_forward.1} parent=1 // pred_region
      _
    $region29: #{conv_ts_mixer_forward.1} parent=1 // pred_fallthru
      _
    // Predicated region
    $region30: #{conv_ts_mixer_forward.1} parent=1 // pred_check
      _
    $region31: #{conv_ts_mixer_forward.1} parent=1 // pred_check_branch
      %1182 = sbr.rel (0) target = $region33
    $region32: #{conv_ts_mixer_forward.1} parent=1 // pred_region
      _
    $region33: #{conv_ts_mixer_forward.1} parent=1 // pred_fallthru
      _
    %1183 = vsyncpa [#allocation3], 1

</llo_original>
